<compile_context>
chip_gen: v5e
topology: v5e:2x2
jax: 0.10.0
libtpu: 0.0.40
codegen_flags: <defaults>
</compile_context>

<pallas_src>
import functools

import jax
import jax.numpy as jnp
from jax import lax
from jax.experimental import pallas as pl
from jax.experimental.pallas import tpu as pltpu


_RANK_UPDATE_MAX = 8   # first layer uses VPU rank-d updates when n_features <= this


def _round_up(x, m):
    return ((x + m - 1) // m) * m


# ----------------------------------------------------------------------------
# In-kernel MLP up to (and including) the penultimate ReLU.
#   * first layer: VPU rank-d broadcast updates for tiny feature dims,
#     bf16 MXU matmul otherwise (rows [0, col0) of w0 are zero -> marker lane safe)
#   * hidden layers: bf16 MXU matmuls, f32 accumulation / bias / ReLU
# ----------------------------------------------------------------------------
def _mlp_pen(inp, col0, nfeat, wrefs, nh):
    w0_ref, b0_ref = wrefs[0], wrefs[1]
    if nfeat <= _RANK_UPDATE_MAX:
        h = inp[:, col0:col0 + 1] * w0_ref[col0:col0 + 1, :].astype(jnp.float32)
        for d in range(1, nfeat):
            c = col0 + d
            h = h + inp[:, c:c + 1] * w0_ref[c:c + 1, :].astype(jnp.float32)
        h = h + b0_ref[...]
    else:
        h = jnp.dot(inp[:, :col0 + nfeat].astype(jnp.bfloat16), w0_ref[...],
                    preferred_element_type=jnp.float32) + b0_ref[...]
    h = jnp.maximum(h, 0.0)
    for i in range(nh):                                  # static, unrolled
        h = jnp.dot(h.astype(jnp.bfloat16), wrefs[2][i],
                    preferred_element_type=jnp.float32) + wrefs[3][i]
        h = jnp.maximum(h, 0.0)
    return h


# ----------------------------------------------------------------------------
# Fused embedder kernel (one row tile per grid step)
# ----------------------------------------------------------------------------
def _embedder_kernel(*refs, nh):
    x_ref, y_ref = refs[0], refs[1]
    per = 4 if nh > 0 else 2
    k = 2
    xw = refs[k:k + per]; k += per
    yw = refs[k:k + per]; k += per
    wout_ref, blx_ref, bly_ref, out_ref = refs[k], refs[k + 1], refs[k + 2], refs[k + 3]

    x = x_ref[...]                               # f32 [tm, dim_xc]   (lane 0 = marker)
    y = y_ref[...]                               # f32 [tm, dim_yc+1] (last lane = is_ctx)
    tm = x.shape[0]
    nfx = x.shape[1] - 1
    nfy = y.shape[1] - 1
    hp = xw[1].shape[-1]
    vp = wout_ref.shape[0] - 2 * hp

    ids = x[:, 0:1].astype(jnp.int32)            # torch-style trunc-toward-zero .int()
    mask_x = (ids == 1).astype(jnp.float32)      # [tm, 1]
    is_ctx = y[:, nfy:nfy + 1]                   # [tm, 1], exactly 0.0 / 1.0

    hx = _mlp_pen(x, 1, nfx, xw, nh)             # f32 [tm, hp]
    hy = _mlp_pen(y, 0, nfy, yw, nh)             # f32 [tm, hp]

    # Marker-embedding one-hot counts (built directly in bf16):
    #   context rows: E[id]          target rows: E[0] + E[id]
    iota_v = lax.broadcasted_iota(jnp.int32, (tm, vp), 1)
    not_ctx = (1.0 - is_ctx).astype(jnp.bfloat16)
    cnt = (iota_v == ids).astype(jnp.bfloat16) \
        + not_ctx * (iota_v == 0).astype(jnp.bfloat16)

    # Single fused output matmul: [mask*hx | is_ctx*hy | cnt] @ [wlx ; wly ; E]
    lhs = jnp.concatenate([(hx * mask_x).astype(jnp.bfloat16),
                           (hy * is_ctx).astype(jnp.bfloat16),
                           cnt], axis=-1)        # bf16 [tm, 2*hp + vp]
    out = jnp.dot(lhs, wout_ref[...], preferred_element_type=jnp.float32)
    out = out + mask_x * blx_ref[...] + is_ctx * bly_ref[...]
    out_ref[...] = out.astype(out_ref.dtype)


# ----------------------------------------------------------------------------
# Parameter construction (torch-default init, laid out for the fused kernel)
# ----------------------------------------------------------------------------
def init_embedder_marker_params(key, *, dim_xc, dim_yc, num_latent,
                                dim_hid, dim_out, emb_depth):
    assert emb_depth >= 2
    f32, bf16 = jnp.float32, jnp.bfloat16
    dx, dy = dim_xc - 1, dim_yc
    nh = emb_depth - 2
    V = 2 + num_latent
    hp = _round_up(dim_hid, 128)
    doutp = _round_up(dim_out, 128)
    vp = _round_up(V, 128)

    def linear(kw, kb, fin, fout, rows, pout, row0=0, wdtype=bf16):
        bound = 1.0 / float(fin) ** 0.5
        w = jax.random.uniform(kw, (fin, fout), f32, -bound, bound)
        b = jax.random.uniform(kb, (fout,), f32, -bound, bound)
        wp = jnp.zeros((rows, pout), f32).at[row0:row0 + fin, :fout].set(w)
        bp = jnp.zeros((1, pout), f32).at[0, :fout].set(b)
        return wp.astype(wdtype), bp

    def make_mlp(k, fin, in_rows, row0):
        ks = jax.random.split(k, 2 * emb_depth)
        wdtype = f32 if fin <= _RANK_UPDATE_MAX else bf16   # rank-update path stays f32
        p = {}
        p["w0"], p["b0"] = linear(ks[0], ks[1], fin, dim_hid, in_rows, hp,
                                  row0=row0, wdtype=wdtype)
        if nh > 0:
            whs, bhs = [], []
            for i in range(nh):
                w, b = linear(ks[2 + 2 * i], ks[3 + 2 * i], dim_hid, dim_hid, hp, hp)
                whs.append(w); bhs.append(b)
            p["wh"] = jnp.stack(whs)             # [nh, hp, hp] bf16
            p["bh"] = jnp.stack(bhs)             # [nh, 1, hp]  f32
        wl, bl = linear(ks[-2], ks[-1], dim_hid, dim_out, hp, doutp)
        return p, wl, bl

    kx, ky, ke = jax.random.split(key, 3)
    mlpx, wlx, blx = make_mlp(kx, dx, dim_xc, 1)   # row 0 of w0x (marker lane) stays zero
    mlpy, wly, bly = make_mlp(ky, dy, dy, 0)

    emb = jax.random.normal(ke, (V, dim_out), f32)           # nn.Embedding default N(0,1)
    embp = jnp.zeros((vp, doutp), f32).at[:V, :dim_out].set(emb).astype(bf16)
    w_out = jnp.concatenate([wlx, wly, embp], axis=0)        # [2*hp + vp, doutp] bf16

    return dict(mlpx=mlpx, mlpy=mlpy, w_out=w_out, blx=blx, bly=bly,
                dim_out=dim_out, n_hidden=nh, hp=hp, doutp=doutp, vp=vp,
                num_marker=V)


# ----------------------------------------------------------------------------
# Row-tile selection: VMEM-budgeted, >=2 blocks for megacore, 256-aligned when big
# ----------------------------------------------------------------------------
def _pick_row_tile(rows, row_tile, per_row_bytes, budget_bytes=20 * 1024 * 1024):
    cap = max(256, min(2048, (budget_bytes // max(per_row_bytes, 1)) // 256 * 256))
    if rows < 128:
        return _round_up(rows, 8)
    half = pl.cdiv(rows, 2)                     # always >= 2 blocks (v7x megacore)
    if half < 256:
        return _round_up(half, 8)
    return max(256, min(row_tile, cap, (half // 256) * 256))


# ----------------------------------------------------------------------------
# Wrapper: minimal input glue (no lane padding) + Pallas call
# ----------------------------------------------------------------------------
def embedder_marker_forward(xc, yc, xt, yt, params, *, row_tile=1024):
    del yt                                      # only selects E[0]; reproduced in-kernel
    f32 = jnp.float32
    B, Nc, dim_xc = xc.shape
    Nt = xt.shape[1]
    dy = yc.shape[-1]
    rows = B * (Nc + Nt)

    hp, doutp, vp = params["hp"], params["doutp"], params["vp"]
    dout, nh = params["dim_out"], params["n_hidden"]

    # unpadded input slabs; is_ctx rides as one extra lane of the y slab
    x_slab = jnp.concatenate([xc.astype(f32), xt.astype(f32)],
                             axis=1).reshape(rows, dim_xc)
    y_ctx = jnp.concatenate([yc.astype(f32), jnp.ones((B, Nc, 1), f32)], axis=-1)
    y_tgt = jnp.zeros((B, Nt, dy + 1), f32)     # y-MLP masked out on target rows
    y_slab = jnp.concatenate([y_ctx, y_tgt], axis=1).reshape(rows, dy + 1)

    # row tile / grid
    per_row = (2 * (dim_xc + dy + 1) * 4 + 2 * doutp * 4 + 2 * hp * 4
               + (2 * hp + vp) * 2 + vp * 2 + doutp * 4)
    tm = _pick_row_tile(rows, row_tile, per_row)
    grid = (pl.cdiv(rows, tm),)

    # grid-invariant weights
    w_args = []
    for p in (params["mlpx"], params["mlpy"]):
        w_args += [p["w0"], p["b0"]]
        if nh > 0:
            w_args += [p["wh"], p["bh"]]
    w_args += [params["w_out"], params["blx"], params["bly"]]
    weight_bytes = sum(int(a.size) * a.dtype.itemsize for a in w_args)

    flops = 2 * rows * ((dim_xc - 1) * hp + dy * hp + 2 * nh * hp * hp
                        + (2 * hp + vp) * doutp)
    bytes_accessed = rows * ((dim_xc + dy + 1) * 4 + doutp * 4) + weight_bytes
    vmem_limit = int(min(96 << 20,
                         max(32 << 20, 2 * weight_bytes + tm * per_row + (8 << 20))))

    def _const_spec(shape, mode):
        ndim = len(shape)
        imap = lambda i: (0,) * ndim
        if mode is None:
            return pl.BlockSpec(shape, imap)
        return pl.BlockSpec(shape, imap, pipeline_mode=mode)

    def _call(weight_mode):
        in_specs = ([pl.BlockSpec((tm, dim_xc), lambda i: (i, 0)),
                     pl.BlockSpec((tm, dy + 1), lambda i: (i, 0))]
                    + [_const_spec(a.shape, weight_mode) for a in w_args])
        return pl.pallas_call(
            functools.partial(_embedder_kernel, nh=nh),
            out_shape=jax.ShapeDtypeStruct((rows, doutp), f32),
            grid_spec=pltpu.PrefetchScalarGridSpec(
                num_scalar_prefetch=0,
                grid=grid,
                in_specs=in_specs,
                out_specs=pl.BlockSpec((tm, doutp), lambda i: (i, 0))),
            compiler_params=pltpu.CompilerParams(
                dimension_semantics=("parallel",),
                vmem_limit_bytes=vmem_limit),
            cost_estimate=pl.CostEstimate(flops=flops, transcendentals=0,
                                          bytes_accessed=bytes_accessed),
        )(x_slab, y_slab, *w_args)

    try:
        # weights / biases / embedding never change across the grid -> single buffer
        out_flat = _call(pl.Buffered(1))
    except Exception:
        # pipeline_mode / Buffered(1) unsupported on this jax version -> default buffering
        out_flat = _call(None)

    out = out_flat.reshape(B, Nc + Nt, doutp)
    if dout != doutp:
        # TODO(synk): let the downstream consumer take the lane-padded slab instead.
        out = out[:, :, :dout]
    return out


# ----------------------------------------------------------------------------
# Pure-JAX reference mirroring the kernel's mixed-precision contract
# ----------------------------------------------------------------------------
def reference_forward(xc, yc, xt, yt, params):
    del yt
    f32, bf16 = jnp.float32, jnp.bfloat16
    nh, hp, dout = params["n_hidden"], params["hp"], params["dim_out"]
    w_out = params["w_out"]
    wlx, wly = w_out[:hp], w_out[hp:2 * hp]
    E = w_out[2 * hp:].astype(f32)

    def mlp_pen(feat, p):
        d = feat.shape[-1]
        w0, b0 = p["w0"], p["b0"]
        start = w0.shape[0] - d
        if d <= _RANK_UPDATE_MAX:
            h = feat[..., 0:1] * w0[start].astype(f32)
            for i in range(1, d):
                h = h + feat[..., i:i + 1] * w0[start + i].astype(f32)
            h = h + b0[0]
        else:
            h = jnp.einsum("...d,dh->...h", feat.astype(bf16), w0[start:],
                           preferred_element_type=f32) + b0[0]
        h = jnp.maximum(h, 0.0)
        for i in range(nh):
            h = jnp.einsum("...h,hk->...k", h.astype(bf16), p["wh"][i],
                           preferred_element_type=f32) + p["bh"][i, 0]
            h = jnp.maximum(h, 0.0)
        return h

    def final(pen, mask, wl, bl):
        return jnp.einsum("...h,hk->...k", (pen * mask).astype(bf16), wl,
                          preferred_element_type=f32) + mask * bl[0]

    idc = xc[:, :, 0].astype(jnp.int32)
    idt = xt[:, :, 0].astype(jnp.int32)
    mxc = (idc == 1).astype(f32)[..., None]
    mxt = (idt == 1).astype(f32)[..., None]

    px_c = mlp_pen(xc[:, :, 1:].astype(f32), params["mlpx"])
    px_t = mlp_pen(xt[:, :, 1:].astype(f32), params["mlpx"])
    py_c = mlp_pen(yc.astype(f32), params["mlpy"])

    one = jnp.ones_like(mxc)
    ctx = final(px_c, mxc, wlx, params["blx"]) \
        + final(py_c, one, wly, params["bly"]) + E[idc]
    tgt = final(px_t, mxt, wlx, params["blx"]) + E[0] + E[idt]
    res = jnp.concatenate([ctx, tgt], axis=1)
    return res[:, :, :dout]


if __name__ == "__main__":
    B, Nc, Nt = 2, 8, 8
    dim_xc, dim_yc = 4, 1
    num_latent = 2
    dim_hid, dim_out, emb_depth = 32, 32, 4
    V = 2 + num_latent

    key = jax.random.PRNGKey(0)
    kpar, kic, kit, kxc, kyc, kxt, kyt = jax.random.split(key, 7)

    params = init_embedder_marker_params(
        kpar, dim_xc=dim_xc, dim_yc=dim_yc, num_latent=num_latent,
        dim_hid=dim_hid, dim_out=dim_out, emb_depth=emb_depth)

    # marker / latent ids live in feature 0 of xc / xt (stored as floats)
    idc = jax.random.randint(kic, (B, Nc, 1), 0, V).astype(jnp.float32)
    idt = jax.random.randint(kit, (B, Nt, 1), 0, V).astype(jnp.float32)
    xc = jnp.concatenate(
        [idc, jax.random.normal(kxc, (B, Nc, dim_xc - 1), jnp.float32)], -1)
    xt = jnp.concatenate(
        [idt, jax.random.normal(kxt, (B, Nt, dim_xc - 1), jnp.float32)], -1)
    yc = jax.random.normal(kyc, (B, Nc, dim_yc), jnp.float32)
    yt = jax.random.normal(kyt, (B, Nt, dim_yc), jnp.float32)

    out = embedder_marker_forward(xc, yc, xt, yt, params)
    out = jax.block_until_ready(out)

    ref = reference_forward(xc, yc, xt, yt, params)
    assert out.shape == (B, Nc + Nt, dim_out), out.shape
    assert jnp.allclose(out, ref, atol=1e-3, rtol=1e-3), \
        float(jnp.max(jnp.abs(out - ref)))

    print("KERNEL_OK")
</pallas_src>

<mosaic_0001>
module attributes {stable_mosaic.version = 11 : i64} {
  func.func @_embedder_kernel(%arg0: i32, %arg1: memref<32x4xf32, #tpu.memory_space<vmem>>, %arg2: memref<32x2xf32, #tpu.memory_space<vmem>>, %arg3: memref<4x128xf32, #tpu.memory_space<vmem>>, %arg4: memref<1x128xf32, #tpu.memory_space<vmem>>, %arg5: memref<2x128x128xbf16, #tpu.memory_space<vmem>>, %arg6: memref<2x1x128xf32, #tpu.memory_space<vmem>>, %arg7: memref<1x128xf32, #tpu.memory_space<vmem>>, %arg8: memref<1x128xf32, #tpu.memory_space<vmem>>, %arg9: memref<2x128x128xbf16, #tpu.memory_space<vmem>>, %arg10: memref<2x1x128xf32, #tpu.memory_space<vmem>>, %arg11: memref<384x128xbf16, #tpu.memory_space<vmem>>, %arg12: memref<1x128xf32, #tpu.memory_space<vmem>>, %arg13: memref<1x128xf32, #tpu.memory_space<vmem>>, %arg14: memref<32x128xf32, #tpu.memory_space<vmem>>) attributes {dimension_semantics = [#tpu.dimension_semantics<parallel>], iteration_bounds = array<i64: 1>, scalar_prefetch = 0 : i64, scratch_operands = 0 : i64, tpu.core_type = #tpu.core_type<tc>, window_params = [{transform_indices = @transform_0, window_bounds = array<i64: 32, 4>}, {transform_indices = @transform_1, window_bounds = array<i64: 32, 2>}, {pipeline_mode = #tpu.pipeline_mode<synchronous>, transform_indices = @transform_2, window_bounds = array<i64: 4, 128>}, {pipeline_mode = #tpu.pipeline_mode<synchronous>, transform_indices = @transform_3, window_bounds = array<i64: 1, 128>}, {pipeline_mode = #tpu.pipeline_mode<synchronous>, transform_indices = @transform_4, window_bounds = array<i64: 2, 128, 128>}, {pipeline_mode = #tpu.pipeline_mode<synchronous>, transform_indices = @transform_5, window_bounds = array<i64: 2, 1, 128>}, {pipeline_mode = #tpu.pipeline_mode<synchronous>, transform_indices = @transform_6, window_bounds = array<i64: 1, 128>}, {pipeline_mode = #tpu.pipeline_mode<synchronous>, transform_indices = @transform_7, window_bounds = array<i64: 1, 128>}, {pipeline_mode = #tpu.pipeline_mode<synchronous>, transform_indices = @transform_8, window_bounds = array<i64: 2, 128, 128>}, {pipeline_mode = #tpu.pipeline_mode<synchronous>, transform_indices = @transform_9, window_bounds = array<i64: 2, 1, 128>}, {pipeline_mode = #tpu.pipeline_mode<synchronous>, transform_indices = @transform_10, window_bounds = array<i64: 384, 128>}, {pipeline_mode = #tpu.pipeline_mode<synchronous>, transform_indices = @transform_11, window_bounds = array<i64: 1, 128>}, {pipeline_mode = #tpu.pipeline_mode<synchronous>, transform_indices = @transform_12, window_bounds = array<i64: 1, 128>}, {transform_indices = @transform_13, window_bounds = array<i64: 32, 128>}]} {
    %c0 = arith.constant 0 : index
    %c0_0 = arith.constant 0 : index
    %0 = vector.load %arg1[%c0, %c0_0] : memref<32x4xf32, #tpu.memory_space<vmem>>, vector<32x4xf32>
    %c0_1 = arith.constant 0 : index
    %c0_2 = arith.constant 0 : index
    %1 = vector.load %arg2[%c0_1, %c0_2] : memref<32x2xf32, #tpu.memory_space<vmem>>, vector<32x2xf32>
    %2 = vector.extract_strided_slice %0 {offsets = [0, 0], sizes = [32, 1], strides = [1, 1]} : vector<32x4xf32> to vector<32x1xf32>
    %3 = arith.fptosi %2 : vector<32x1xf32> to vector<32x1xi32>
    %c1_i32 = arith.constant 1 : i32
    %4 = vector.broadcast %c1_i32 : i32 to vector<32x1xi32>
    %5 = arith.cmpi eq, %3, %4 : vector<32x1xi32>
    %6 = arith.extui %5 : vector<32x1xi1> to vector<32x1xi32>
    %7 = arith.sitofp %6 : vector<32x1xi32> to vector<32x1xf32>
    %8 = vector.extract_strided_slice %1 {offsets = [0, 1], sizes = [32, 1], strides = [1, 1]} : vector<32x2xf32> to vector<32x1xf32>
    %9 = vector.extract_strided_slice %0 {offsets = [0, 1], sizes = [32, 1], strides = [1, 1]} : vector<32x4xf32> to vector<32x1xf32>
    %c1 = arith.constant 1 : index
    %c0_3 = arith.constant 0 : index
    %10 = vector.load %arg3[%c1, %c0_3] : memref<4x128xf32, #tpu.memory_space<vmem>>, vector<1x128xf32>
    %11 = vector.broadcast %9 : vector<32x1xf32> to vector<32x128xf32>
    %12 = vector.broadcast %10 : vector<1x128xf32> to vector<32x128xf32>
    %13 = arith.mulf %11, %12 : vector<32x128xf32>
    %14 = vector.extract_strided_slice %0 {offsets = [0, 2], sizes = [32, 1], strides = [1, 1]} : vector<32x4xf32> to vector<32x1xf32>
    %c2 = arith.constant 2 : index
    %c0_4 = arith.constant 0 : index
    %15 = vector.load %arg3[%c2, %c0_4] : memref<4x128xf32, #tpu.memory_space<vmem>>, vector<1x128xf32>
    %16 = vector.broadcast %14 : vector<32x1xf32> to vector<32x128xf32>
    %17 = vector.broadcast %15 : vector<1x128xf32> to vector<32x128xf32>
    %18 = arith.mulf %16, %17 : vector<32x128xf32>
    %19 = arith.addf %13, %18 : vector<32x128xf32>
    %20 = vector.extract_strided_slice %0 {offsets = [0, 3], sizes = [32, 1], strides = [1, 1]} : vector<32x4xf32> to vector<32x1xf32>
    %c3 = arith.constant 3 : index
    %c0_5 = arith.constant 0 : index
    %21 = vector.load %arg3[%c3, %c0_5] : memref<4x128xf32, #tpu.memory_space<vmem>>, vector<1x128xf32>
    %22 = vector.broadcast %20 : vector<32x1xf32> to vector<32x128xf32>
    %23 = vector.broadcast %21 : vector<1x128xf32> to vector<32x128xf32>
    %24 = arith.mulf %22, %23 : vector<32x128xf32>
    %25 = arith.addf %19, %24 : vector<32x128xf32>
    %c0_6 = arith.constant 0 : index
    %c0_7 = arith.constant 0 : index
    %26 = vector.load %arg4[%c0_6, %c0_7] : memref<1x128xf32, #tpu.memory_space<vmem>>, vector<1x128xf32>
    %27 = vector.broadcast %26 : vector<1x128xf32> to vector<32x128xf32>
    %28 = arith.addf %25, %27 : vector<32x128xf32>
    %cst = arith.constant 0.000000e+00 : f32
    %29 = vector.broadcast %cst : f32 to vector<32x128xf32>
    %30 = arith.maximumf %28, %29 : vector<32x128xf32>
    %31 = arith.truncf %30 : vector<32x128xf32> to vector<32x128xbf16>
    %c0_8 = arith.constant 0 : index
    %c0_9 = arith.constant 0 : index
    %c0_10 = arith.constant 0 : index
    %32 = vector.load %arg5[%c0_8, %c0_9, %c0_10] : memref<2x128x128xbf16, #tpu.memory_space<vmem>>, vector<1x128x128xbf16>
    %33 = vector.shape_cast %32 : vector<1x128x128xbf16> to vector<128x128xbf16>
    %cst_11 = arith.constant dense<0.000000e+00> : vector<32x128xf32>
    %34 = tpu.matmul %31, %33, %cst_11 {dimension_numbers = #tpu.dot_dimension_numbers<[1], [0], [0], [1], [0, 0, 1, 1], [], []>} : vector<32x128xbf16>, vector<128x128xbf16>, vector<32x128xf32> -> vector<32x128xf32>
    %c0_12 = arith.constant 0 : index
    %c0_13 = arith.constant 0 : index
    %c0_14 = arith.constant 0 : index
    %35 = vector.load %arg6[%c0_12, %c0_13, %c0_14] : memref<2x1x128xf32, #tpu.memory_space<vmem>>, vector<1x1x128xf32>
    %36 = vector.shape_cast %35 : vector<1x1x128xf32> to vector<1x128xf32>
    %37 = vector.broadcast %36 : vector<1x128xf32> to vector<32x128xf32>
    %38 = arith.addf %34, %37 : vector<32x128xf32>
    %cst_15 = arith.constant 0.000000e+00 : f32
    %39 = vector.broadcast %cst_15 : f32 to vector<32x128xf32>
    %40 = arith.maximumf %38, %39 : vector<32x128xf32>
    %41 = arith.truncf %40 : vector<32x128xf32> to vector<32x128xbf16>
    %c1_16 = arith.constant 1 : index
    %c0_17 = arith.constant 0 : index
    %c0_18 = arith.constant 0 : index
    %42 = vector.load %arg5[%c1_16, %c0_17, %c0_18] : memref<2x128x128xbf16, #tpu.memory_space<vmem>>, vector<1x128x128xbf16>
    %43 = vector.shape_cast %42 : vector<1x128x128xbf16> to vector<128x128xbf16>
    %cst_19 = arith.constant dense<0.000000e+00> : vector<32x128xf32>
    %44 = tpu.matmul %41, %43, %cst_19 {dimension_numbers = #tpu.dot_dimension_numbers<[1], [0], [0], [1], [0, 0, 1, 1], [], []>} : vector<32x128xbf16>, vector<128x128xbf16>, vector<32x128xf32> -> vector<32x128xf32>
    %c1_20 = arith.constant 1 : index
    %c0_21 = arith.constant 0 : index
    %c0_22 = arith.constant 0 : index
    %45 = vector.load %arg6[%c1_20, %c0_21, %c0_22] : memref<2x1x128xf32, #tpu.memory_space<vmem>>, vector<1x1x128xf32>
    %46 = vector.shape_cast %45 : vector<1x1x128xf32> to vector<1x128xf32>
    %47 = vector.broadcast %46 : vector<1x128xf32> to vector<32x128xf32>
    %48 = arith.addf %44, %47 : vector<32x128xf32>
    %cst_23 = arith.constant 0.000000e+00 : f32
    %49 = vector.broadcast %cst_23 : f32 to vector<32x128xf32>
    %50 = arith.maximumf %48, %49 : vector<32x128xf32>
    %51 = vector.extract_strided_slice %1 {offsets = [0, 0], sizes = [32, 1], strides = [1, 1]} : vector<32x2xf32> to vector<32x1xf32>
    %c0_24 = arith.constant 0 : index
    %c0_25 = arith.constant 0 : index
    %52 = vector.load %arg7[%c0_24, %c0_25] : memref<1x128xf32, #tpu.memory_space<vmem>>, vector<1x128xf32>
    %53 = vector.broadcast %51 : vector<32x1xf32> to vector<32x128xf32>
    %54 = vector.broadcast %52 : vector<1x128xf32> to vector<32x128xf32>
    %55 = arith.mulf %53, %54 : vector<32x128xf32>
    %c0_26 = arith.constant 0 : index
    %c0_27 = arith.constant 0 : index
    %56 = vector.load %arg8[%c0_26, %c0_27] : memref<1x128xf32, #tpu.memory_space<vmem>>, vector<1x128xf32>
    %57 = vector.broadcast %56 : vector<1x128xf32> to vector<32x128xf32>
    %58 = arith.addf %55, %57 : vector<32x128xf32>
    %cst_28 = arith.constant 0.000000e+00 : f32
    %59 = vector.broadcast %cst_28 : f32 to vector<32x128xf32>
    %60 = arith.maximumf %58, %59 : vector<32x128xf32>
    %61 = arith.truncf %60 : vector<32x128xf32> to vector<32x128xbf16>
    %c0_29 = arith.constant 0 : index
    %c0_30 = arith.constant 0 : index
    %c0_31 = arith.constant 0 : index
    %62 = vector.load %arg9[%c0_29, %c0_30, %c0_31] : memref<2x128x128xbf16, #tpu.memory_space<vmem>>, vector<1x128x128xbf16>
    %63 = vector.shape_cast %62 : vector<1x128x128xbf16> to vector<128x128xbf16>
    %cst_32 = arith.constant dense<0.000000e+00> : vector<32x128xf32>
    %64 = tpu.matmul %61, %63, %cst_32 {dimension_numbers = #tpu.dot_dimension_numbers<[1], [0], [0], [1], [0, 0, 1, 1], [], []>} : vector<32x128xbf16>, vector<128x128xbf16>, vector<32x128xf32> -> vector<32x128xf32>
    %c0_33 = arith.constant 0 : index
    %c0_34 = arith.constant 0 : index
    %c0_35 = arith.constant 0 : index
    %65 = vector.load %arg10[%c0_33, %c0_34, %c0_35] : memref<2x1x128xf32, #tpu.memory_space<vmem>>, vector<1x1x128xf32>
    %66 = vector.shape_cast %65 : vector<1x1x128xf32> to vector<1x128xf32>
    %67 = vector.broadcast %66 : vector<1x128xf32> to vector<32x128xf32>
    %68 = arith.addf %64, %67 : vector<32x128xf32>
    %cst_36 = arith.constant 0.000000e+00 : f32
    %69 = vector.broadcast %cst_36 : f32 to vector<32x128xf32>
    %70 = arith.maximumf %68, %69 : vector<32x128xf32>
    %71 = arith.truncf %70 : vector<32x128xf32> to vector<32x128xbf16>
    %c1_37 = arith.constant 1 : index
    %c0_38 = arith.constant 0 : index
    %c0_39 = arith.constant 0 : index
    %72 = vector.load %arg9[%c1_37, %c0_38, %c0_39] : memref<2x128x128xbf16, #tpu.memory_space<vmem>>, vector<1x128x128xbf16>
    %73 = vector.shape_cast %72 : vector<1x128x128xbf16> to vector<128x128xbf16>
    %cst_40 = arith.constant dense<0.000000e+00> : vector<32x128xf32>
    %74 = tpu.matmul %71, %73, %cst_40 {dimension_numbers = #tpu.dot_dimension_numbers<[1], [0], [0], [1], [0, 0, 1, 1], [], []>} : vector<32x128xbf16>, vector<128x128xbf16>, vector<32x128xf32> -> vector<32x128xf32>
    %c1_41 = arith.constant 1 : index
    %c0_42 = arith.constant 0 : index
    %c0_43 = arith.constant 0 : index
    %75 = vector.load %arg10[%c1_41, %c0_42, %c0_43] : memref<2x1x128xf32, #tpu.memory_space<vmem>>, vector<1x1x128xf32>
    %76 = vector.shape_cast %75 : vector<1x1x128xf32> to vector<1x128xf32>
    %77 = vector.broadcast %76 : vector<1x128xf32> to vector<32x128xf32>
    %78 = arith.addf %74, %77 : vector<32x128xf32>
    %cst_44 = arith.constant 0.000000e+00 : f32
    %79 = vector.broadcast %cst_44 : f32 to vector<32x128xf32>
    %80 = arith.maximumf %78, %79 : vector<32x128xf32>
    %81 = tpu.iota {dimensions = array<i32: 1>} : vector<32x128xi32>
    %cst_45 = arith.constant 1.000000e+00 : f32
    %82 = vector.broadcast %cst_45 : f32 to vector<32x1xf32>
    %83 = arith.subf %82, %8 : vector<32x1xf32>
    %84 = arith.truncf %83 : vector<32x1xf32> to vector<32x1xbf16>
    %85 = vector.broadcast %3 : vector<32x1xi32> to vector<32x128xi32>
    %86 = arith.cmpi eq, %81, %85 : vector<32x128xi32>
    %87 = arith.extui %86 : vector<32x128xi1> to vector<32x128xi32>
    %88 = arith.sitofp %87 : vector<32x128xi32> to vector<32x128xf32>
    %89 = arith.truncf %88 : vector<32x128xf32> to vector<32x128xbf16>
    %c0_i32 = arith.constant 0 : i32
    %90 = vector.broadcast %c0_i32 : i32 to vector<32x128xi32>
    %91 = arith.cmpi eq, %81, %90 : vector<32x128xi32>
    %92 = arith.extui %91 : vector<32x128xi1> to vector<32x128xi32>
    %93 = arith.sitofp %92 : vector<32x128xi32> to vector<32x128xf32>
    %94 = arith.truncf %93 : vector<32x128xf32> to vector<32x128xbf16>
    %95 = vector.broadcast %84 : vector<32x1xbf16> to vector<32x128xbf16>
    %96 = arith.mulf %95, %94 : vector<32x128xbf16>
    %97 = arith.addf %89, %96 : vector<32x128xbf16>
    %98 = vector.broadcast %7 : vector<32x1xf32> to vector<32x128xf32>
    %99 = arith.mulf %50, %98 : vector<32x128xf32>
    %100 = arith.truncf %99 : vector<32x128xf32> to vector<32x128xbf16>
    %101 = vector.broadcast %8 : vector<32x1xf32> to vector<32x128xf32>
    %102 = arith.mulf %80, %101 : vector<32x128xf32>
    %103 = arith.truncf %102 : vector<32x128xf32> to vector<32x128xbf16>
    %104 = tpu.concatenate %100, %103, %97 in 1 : vector<32x128xbf16>, vector<32x128xbf16>, vector<32x128xbf16> -> vector<32x384xbf16>
    %c0_46 = arith.constant 0 : index
    %c0_47 = arith.constant 0 : index
    %105 = vector.load %arg11[%c0_46, %c0_47] : memref<384x128xbf16, #tpu.memory_space<vmem>>, vector<384x128xbf16>
    %cst_48 = arith.constant dense<0.000000e+00> : vector<32x128xf32>
    %106 = tpu.matmul %104, %105, %cst_48 {dimension_numbers = #tpu.dot_dimension_numbers<[1], [0], [0], [1], [0, 0, 1, 1], [], []>} : vector<32x384xbf16>, vector<384x128xbf16>, vector<32x128xf32> -> vector<32x128xf32>
    %c0_49 = arith.constant 0 : index
    %c0_50 = arith.constant 0 : index
    %107 = vector.load %arg12[%c0_49, %c0_50] : memref<1x128xf32, #tpu.memory_space<vmem>>, vector<1x128xf32>
    %108 = vector.broadcast %7 : vector<32x1xf32> to vector<32x128xf32>
    %109 = vector.broadcast %107 : vector<1x128xf32> to vector<32x128xf32>
    %110 = arith.mulf %108, %109 : vector<32x128xf32>
    %111 = arith.addf %106, %110 : vector<32x128xf32>
    %c0_51 = arith.constant 0 : index
    %c0_52 = arith.constant 0 : index
    %112 = vector.load %arg13[%c0_51, %c0_52] : memref<1x128xf32, #tpu.memory_space<vmem>>, vector<1x128xf32>
    %113 = vector.broadcast %8 : vector<32x1xf32> to vector<32x128xf32>
    %114 = vector.broadcast %112 : vector<1x128xf32> to vector<32x128xf32>
    %115 = arith.mulf %113, %114 : vector<32x128xf32>
    %116 = arith.addf %111, %115 : vector<32x128xf32>
    %c0_53 = arith.constant 0 : index
    %c0_54 = arith.constant 0 : index
    %117 = vector.load %arg14[%c0_53, %c0_54] : memref<32x128xf32, #tpu.memory_space<vmem>>, vector<32x128xf32>
    tpu.vector_store %arg14[%c0_53, %c0_54], %116 {strides = array<i32>} : memref<32x128xf32, #tpu.memory_space<vmem>>, vector<32x128xf32>,
    return
  }
  func.func @transform_0(%arg0: i32) -> (i32, i32) {
    %c0_i32 = arith.constant 0 : i32
    %c0_i32_0 = arith.constant 0 : i32
    return %arg0, %c0_i32 : i32, i32
  }
  func.func @transform_1(%arg0: i32) -> (i32, i32) {
    %c0_i32 = arith.constant 0 : i32
    %c0_i32_0 = arith.constant 0 : i32
    return %arg0, %c0_i32 : i32, i32
  }
  func.func @transform_2(%arg0: i32) -> (i32, i32) {
    %c0_i32 = arith.constant 0 : i32
    %c0_i32_0 = arith.constant 0 : i32
    %c0_i32_1 = arith.constant 0 : i32
    return %c0_i32, %c0_i32_0 : i32, i32
  }
  func.func @transform_3(%arg0: i32) -> (i32, i32) {
    %c0_i32 = arith.constant 0 : i32
    %c0_i32_0 = arith.constant 0 : i32
    %c0_i32_1 = arith.constant 0 : i32
    return %c0_i32, %c0_i32_0 : i32, i32
  }
  func.func @transform_4(%arg0: i32) -> (i32, i32, i32) {
    %c0_i32 = arith.constant 0 : i32
    %c0_i32_0 = arith.constant 0 : i32
    %c0_i32_1 = arith.constant 0 : i32
    %c0_i32_2 = arith.constant 0 : i32
    return %c0_i32, %c0_i32_0, %c0_i32_1 : i32, i32, i32
  }
  func.func @transform_5(%arg0: i32) -> (i32, i32, i32) {
    %c0_i32 = arith.constant 0 : i32
    %c0_i32_0 = arith.constant 0 : i32
    %c0_i32_1 = arith.constant 0 : i32
    %c0_i32_2 = arith.constant 0 : i32
    return %c0_i32, %c0_i32_0, %c0_i32_1 : i32, i32, i32
  }
  func.func @transform_6(%arg0: i32) -> (i32, i32) {
    %c0_i32 = arith.constant 0 : i32
    %c0_i32_0 = arith.constant 0 : i32
    %c0_i32_1 = arith.constant 0 : i32
    return %c0_i32, %c0_i32_0 : i32, i32
  }
  func.func @transform_7(%arg0: i32) -> (i32, i32) {
    %c0_i32 = arith.constant 0 : i32
    %c0_i32_0 = arith.constant 0 : i32
    %c0_i32_1 = arith.constant 0 : i32
    return %c0_i32, %c0_i32_0 : i32, i32
  }
  func.func @transform_8(%arg0: i32) -> (i32, i32, i32) {
    %c0_i32 = arith.constant 0 : i32
    %c0_i32_0 = arith.constant 0 : i32
    %c0_i32_1 = arith.constant 0 : i32
    %c0_i32_2 = arith.constant 0 : i32
    return %c0_i32, %c0_i32_0, %c0_i32_1 : i32, i32, i32
  }
  func.func @transform_9(%arg0: i32) -> (i32, i32, i32) {
    %c0_i32 = arith.constant 0 : i32
    %c0_i32_0 = arith.constant 0 : i32
    %c0_i32_1 = arith.constant 0 : i32
    %c0_i32_2 = arith.constant 0 : i32
    return %c0_i32, %c0_i32_0, %c0_i32_1 : i32, i32, i32
  }
  func.func @transform_10(%arg0: i32) -> (i32, i32) {
    %c0_i32 = arith.constant 0 : i32
    %c0_i32_0 = arith.constant 0 : i32
    %c0_i32_1 = arith.constant 0 : i32
    return %c0_i32, %c0_i32_0 : i32, i32
  }
  func.func @transform_11(%arg0: i32) -> (i32, i32) {
    %c0_i32 = arith.constant 0 : i32
    %c0_i32_0 = arith.constant 0 : i32
    %c0_i32_1 = arith.constant 0 : i32
    return %c0_i32, %c0_i32_0 : i32, i32
  }
  func.func @transform_12(%arg0: i32) -> (i32, i32) {
    %c0_i32 = arith.constant 0 : i32
    %c0_i32_0 = arith.constant 0 : i32
    %c0_i32_1 = arith.constant 0 : i32
    return %c0_i32, %c0_i32_0 : i32, i32
  }
  func.func @transform_13(%arg0: i32) -> (i32, i32) {
    %c0_i32 = arith.constant 0 : i32
    %c0_i32_0 = arith.constant 0 : i32
    return %arg0, %c0_i32 : i32, i32
  }
}

module attributes {stable_mosaic.version = 11 : i64} {
  func.func @_embedder_kernel(%arg0: i32, %arg1: memref<32x4xf32, #tpu.memory_space<vmem>>, %arg2: memref<32x2xf32, #tpu.memory_space<vmem>>, %arg3: memref<4x128xf32, #tpu.memory_space<vmem>>, %arg4: memref<1x128xf32, #tpu.memory_space<vmem>>, %arg5: memref<2x128x128xbf16, #tpu.memory_space<vmem>>, %arg6: memref<2x1x128xf32, #tpu.memory_space<vmem>>, %arg7: memref<1x128xf32, #tpu.memory_space<vmem>>, %arg8: memref<1x128xf32, #tpu.memory_space<vmem>>, %arg9: memref<2x128x128xbf16, #tpu.memory_space<vmem>>, %arg10: memref<2x1x128xf32, #tpu.memory_space<vmem>>, %arg11: memref<384x128xbf16, #tpu.memory_space<vmem>>, %arg12: memref<1x128xf32, #tpu.memory_space<vmem>>, %arg13: memref<1x128xf32, #tpu.memory_space<vmem>>, %arg14: memref<32x128xf32, #tpu.memory_space<vmem>>) attributes {dimension_semantics = [#tpu.dimension_semantics<parallel>], iteration_bounds = array<i64: 1>, scalar_prefetch = 0 : i64, scratch_operands = 0 : i64, tpu.core_type = #tpu.core_type<tc>, window_params = [{transform_indices = @transform_0, window_bounds = array<i64: 32, 4>}, {transform_indices = @transform_1, window_bounds = array<i64: 32, 2>}, {pipeline_mode = #tpu.pipeline_mode<synchronous>, transform_indices = @transform_2, window_bounds = array<i64: 4, 128>}, {pipeline_mode = #tpu.pipeline_mode<synchronous>, transform_indices = @transform_3, window_bounds = array<i64: 1, 128>}, {pipeline_mode = #tpu.pipeline_mode<synchronous>, transform_indices = @transform_4, window_bounds = array<i64: 2, 128, 128>}, {pipeline_mode = #tpu.pipeline_mode<synchronous>, transform_indices = @transform_5, window_bounds = array<i64: 2, 1, 128>}, {pipeline_mode = #tpu.pipeline_mode<synchronous>, transform_indices = @transform_6, window_bounds = array<i64: 1, 128>}, {pipeline_mode = #tpu.pipeline_mode<synchronous>, transform_indices = @transform_7, window_bounds = array<i64: 1, 128>}, {pipeline_mode = #tpu.pipeline_mode<synchronous>, transform_indices = @transform_8, window_bounds = array<i64: 2, 128, 128>}, {pipeline_mode = #tpu.pipeline_mode<synchronous>, transform_indices = @transform_9, window_bounds = array<i64: 2, 1, 128>}, {pipeline_mode = #tpu.pipeline_mode<synchronous>, transform_indices = @transform_10, window_bounds = array<i64: 384, 128>}, {pipeline_mode = #tpu.pipeline_mode<synchronous>, transform_indices = @transform_11, window_bounds = array<i64: 1, 128>}, {pipeline_mode = #tpu.pipeline_mode<synchronous>, transform_indices = @transform_12, window_bounds = array<i64: 1, 128>}, {transform_indices = @transform_13, window_bounds = array<i64: 32, 128>}]} {
    %c0 = arith.constant 0 : index
    %c0_0 = arith.constant 0 : index
    %0 = vector.load %arg1[%c0, %c0_0] : memref<32x4xf32, #tpu.memory_space<vmem>>, vector<32x4xf32>
    %c0_1 = arith.constant 0 : index
    %c0_2 = arith.constant 0 : index
    %1 = vector.load %arg2[%c0_1, %c0_2] : memref<32x2xf32, #tpu.memory_space<vmem>>, vector<32x2xf32>
    %2 = vector.extract_strided_slice %0 {offsets = [0, 0], sizes = [32, 1], strides = [1, 1]} : vector<32x4xf32> to vector<32x1xf32>
    %3 = arith.fptosi %2 : vector<32x1xf32> to vector<32x1xi32>
    %c1_i32 = arith.constant 1 : i32
    %4 = vector.broadcast %c1_i32 : i32 to vector<32x1xi32>
    %5 = arith.cmpi eq, %3, %4 : vector<32x1xi32>
    %6 = arith.extui %5 : vector<32x1xi1> to vector<32x1xi32>
    %7 = arith.sitofp %6 : vector<32x1xi32> to vector<32x1xf32>
    %8 = vector.extract_strided_slice %1 {offsets = [0, 1], sizes = [32, 1], strides = [1, 1]} : vector<32x2xf32> to vector<32x1xf32>
    %9 = vector.extract_strided_slice %0 {offsets = [0, 1], sizes = [32, 1], strides = [1, 1]} : vector<32x4xf32> to vector<32x1xf32>
    %c1 = arith.constant 1 : index
    %c0_3 = arith.constant 0 : index
    %10 = vector.load %arg3[%c1, %c0_3] : memref<4x128xf32, #tpu.memory_space<vmem>>, vector<1x128xf32>
    %11 = vector.broadcast %9 : vector<32x1xf32> to vector<32x128xf32>
    %12 = vector.broadcast %10 : vector<1x128xf32> to vector<32x128xf32>
    %13 = arith.mulf %11, %12 : vector<32x128xf32>
    %14 = vector.extract_strided_slice %0 {offsets = [0, 2], sizes = [32, 1], strides = [1, 1]} : vector<32x4xf32> to vector<32x1xf32>
    %c2 = arith.constant 2 : index
    %c0_4 = arith.constant 0 : index
    %15 = vector.load %arg3[%c2, %c0_4] : memref<4x128xf32, #tpu.memory_space<vmem>>, vector<1x128xf32>
    %16 = vector.broadcast %14 : vector<32x1xf32> to vector<32x128xf32>
    %17 = vector.broadcast %15 : vector<1x128xf32> to vector<32x128xf32>
    %18 = arith.mulf %16, %17 : vector<32x128xf32>
    %19 = arith.addf %13, %18 : vector<32x128xf32>
    %20 = vector.extract_strided_slice %0 {offsets = [0, 3], sizes = [32, 1], strides = [1, 1]} : vector<32x4xf32> to vector<32x1xf32>
    %c3 = arith.constant 3 : index
    %c0_5 = arith.constant 0 : index
    %21 = vector.load %arg3[%c3, %c0_5] : memref<4x128xf32, #tpu.memory_space<vmem>>, vector<1x128xf32>
    %22 = vector.broadcast %20 : vector<32x1xf32> to vector<32x128xf32>
    %23 = vector.broadcast %21 : vector<1x128xf32> to vector<32x128xf32>
    %24 = arith.mulf %22, %23 : vector<32x128xf32>
    %25 = arith.addf %19, %24 : vector<32x128xf32>
    %c0_6 = arith.constant 0 : index
    %c0_7 = arith.constant 0 : index
    %26 = vector.load %arg4[%c0_6, %c0_7] : memref<1x128xf32, #tpu.memory_space<vmem>>, vector<1x128xf32>
    %27 = vector.broadcast %26 : vector<1x128xf32> to vector<32x128xf32>
    %28 = arith.addf %25, %27 : vector<32x128xf32>
    %cst = arith.constant 0.000000e+00 : f32
    %29 = vector.broadcast %cst : f32 to vector<32x128xf32>
    %30 = arith.maximumf %28, %29 : vector<32x128xf32>
    %31 = arith.truncf %30 : vector<32x128xf32> to vector<32x128xbf16>
    %c0_8 = arith.constant 0 : index
    %c0_9 = arith.constant 0 : index
    %c0_10 = arith.constant 0 : index
    %32 = vector.load %arg5[%c0_8, %c0_9, %c0_10] : memref<2x128x128xbf16, #tpu.memory_space<vmem>>, vector<1x128x128xbf16>
    %33 = vector.shape_cast %32 : vector<1x128x128xbf16> to vector<128x128xbf16>
    %cst_11 = arith.constant dense<0.000000e+00> : vector<32x128xf32>
    %34 = tpu.matmul %31, %33, %cst_11 {dimension_numbers = #tpu.dot_dimension_numbers<[1], [0], [0], [1], [0, 0, 1, 1], [], []>} : vector<32x128xbf16>, vector<128x128xbf16>, vector<32x128xf32> -> vector<32x128xf32>
    %c0_12 = arith.constant 0 : index
    %c0_13 = arith.constant 0 : index
    %c0_14 = arith.constant 0 : index
    %35 = vector.load %arg6[%c0_12, %c0_13, %c0_14] : memref<2x1x128xf32, #tpu.memory_space<vmem>>, vector<1x1x128xf32>
    %36 = vector.shape_cast %35 : vector<1x1x128xf32> to vector<1x128xf32>
    %37 = vector.broadcast %36 : vector<1x128xf32> to vector<32x128xf32>
    %38 = arith.addf %34, %37 : vector<32x128xf32>
    %cst_15 = arith.constant 0.000000e+00 : f32
    %39 = vector.broadcast %cst_15 : f32 to vector<32x128xf32>
    %40 = arith.maximumf %38, %39 : vector<32x128xf32>
    %41 = arith.truncf %40 : vector<32x128xf32> to vector<32x128xbf16>
    %c1_16 = arith.constant 1 : index
    %c0_17 = arith.constant 0 : index
    %c0_18 = arith.constant 0 : index
    %42 = vector.load %arg5[%c1_16, %c0_17, %c0_18] : memref<2x128x128xbf16, #tpu.memory_space<vmem>>, vector<1x128x128xbf16>
    %43 = vector.shape_cast %42 : vector<1x128x128xbf16> to vector<128x128xbf16>
    %cst_19 = arith.constant dense<0.000000e+00> : vector<32x128xf32>
    %44 = tpu.matmul %41, %43, %cst_19 {dimension_numbers = #tpu.dot_dimension_numbers<[1], [0], [0], [1], [0, 0, 1, 1], [], []>} : vector<32x128xbf16>, vector<128x128xbf16>, vector<32x128xf32> -> vector<32x128xf32>
    %c1_20 = arith.constant 1 : index
    %c0_21 = arith.constant 0 : index
    %c0_22 = arith.constant 0 : index
    %45 = vector.load %arg6[%c1_20, %c0_21, %c0_22] : memref<2x1x128xf32, #tpu.memory_space<vmem>>, vector<1x1x128xf32>
    %46 = vector.shape_cast %45 : vector<1x1x128xf32> to vector<1x128xf32>
    %47 = vector.broadcast %46 : vector<1x128xf32> to vector<32x128xf32>
    %48 = arith.addf %44, %47 : vector<32x128xf32>
    %cst_23 = arith.constant 0.000000e+00 : f32
    %49 = vector.broadcast %cst_23 : f32 to vector<32x128xf32>
    %50 = arith.maximumf %48, %49 : vector<32x128xf32>
    %51 = vector.extract_strided_slice %1 {offsets = [0, 0], sizes = [32, 1], strides = [1, 1]} : vector<32x2xf32> to vector<32x1xf32>
    %c0_24 = arith.constant 0 : index
    %c0_25 = arith.constant 0 : index
    %52 = vector.load %arg7[%c0_24, %c0_25] : memref<1x128xf32, #tpu.memory_space<vmem>>, vector<1x128xf32>
    %53 = vector.broadcast %51 : vector<32x1xf32> to vector<32x128xf32>
    %54 = vector.broadcast %52 : vector<1x128xf32> to vector<32x128xf32>
    %55 = arith.mulf %53, %54 : vector<32x128xf32>
    %c0_26 = arith.constant 0 : index
    %c0_27 = arith.constant 0 : index
    %56 = vector.load %arg8[%c0_26, %c0_27] : memref<1x128xf32, #tpu.memory_space<vmem>>, vector<1x128xf32>
    %57 = vector.broadcast %56 : vector<1x128xf32> to vector<32x128xf32>
    %58 = arith.addf %55, %57 : vector<32x128xf32>
    %cst_28 = arith.constant 0.000000e+00 : f32
    %59 = vector.broadcast %cst_28 : f32 to vector<32x128xf32>
    %60 = arith.maximumf %58, %59 : vector<32x128xf32>
    %61 = arith.truncf %60 : vector<32x128xf32> to vector<32x128xbf16>
    %c0_29 = arith.constant 0 : index
    %c0_30 = arith.constant 0 : index
    %c0_31 = arith.constant 0 : index
    %62 = vector.load %arg9[%c0_29, %c0_30, %c0_31] : memref<2x128x128xbf16, #tpu.memory_space<vmem>>, vector<1x128x128xbf16>
    %63 = vector.shape_cast %62 : vector<1x128x128xbf16> to vector<128x128xbf16>
    %cst_32 = arith.constant dense<0.000000e+00> : vector<32x128xf32>
    %64 = tpu.matmul %61, %63, %cst_32 {dimension_numbers = #tpu.dot_dimension_numbers<[1], [0], [0], [1], [0, 0, 1, 1], [], []>} : vector<32x128xbf16>, vector<128x128xbf16>, vector<32x128xf32> -> vector<32x128xf32>
    %c0_33 = arith.constant 0 : index
    %c0_34 = arith.constant 0 : index
    %c0_35 = arith.constant 0 : index
    %65 = vector.load %arg10[%c0_33, %c0_34, %c0_35] : memref<2x1x128xf32, #tpu.memory_space<vmem>>, vector<1x1x128xf32>
    %66 = vector.shape_cast %65 : vector<1x1x128xf32> to vector<1x128xf32>
    %67 = vector.broadcast %66 : vector<1x128xf32> to vector<32x128xf32>
    %68 = arith.addf %64, %67 : vector<32x128xf32>
    %cst_36 = arith.constant 0.000000e+00 : f32
    %69 = vector.broadcast %cst_36 : f32 to vector<32x128xf32>
    %70 = arith.maximumf %68, %69 : vector<32x128xf32>
    %71 = arith.truncf %70 : vector<32x128xf32> to vector<32x128xbf16>
    %c1_37 = arith.constant 1 : index
    %c0_38 = arith.constant 0 : index
    %c0_39 = arith.constant 0 : index
    %72 = vector.load %arg9[%c1_37, %c0_38, %c0_39] : memref<2x128x128xbf16, #tpu.memory_space<vmem>>, vector<1x128x128xbf16>
    %73 = vector.shape_cast %72 : vector<1x128x128xbf16> to vector<128x128xbf16>
    %cst_40 = arith.constant dense<0.000000e+00> : vector<32x128xf32>
    %74 = tpu.matmul %71, %73, %cst_40 {dimension_numbers = #tpu.dot_dimension_numbers<[1], [0], [0], [1], [0, 0, 1, 1], [], []>} : vector<32x128xbf16>, vector<128x128xbf16>, vector<32x128xf32> -> vector<32x128xf32>
    %c1_41 = arith.constant 1 : index
    %c0_42 = arith.constant 0 : index
    %c0_43 = arith.constant 0 : index
    %75 = vector.load %arg10[%c1_41, %c0_42, %c0_43] : memref<2x1x128xf32, #tpu.memory_space<vmem>>, vector<1x1x128xf32>
    %76 = vector.shape_cast %75 : vector<1x1x128xf32> to vector<1x128xf32>
    %77 = vector.broadcast %76 : vector<1x128xf32> to vector<32x128xf32>
    %78 = arith.addf %74, %77 : vector<32x128xf32>
    %cst_44 = arith.constant 0.000000e+00 : f32
    %79 = vector.broadcast %cst_44 : f32 to vector<32x128xf32>
    %80 = arith.maximumf %78, %79 : vector<32x128xf32>
    %81 = tpu.iota {dimensions = array<i32: 1>} : vector<32x128xi32>
    %cst_45 = arith.constant 1.000000e+00 : f32
    %82 = vector.broadcast %cst_45 : f32 to vector<32x1xf32>
    %83 = arith.subf %82, %8 : vector<32x1xf32>
    %84 = arith.truncf %83 : vector<32x1xf32> to vector<32x1xbf16>
    %85 = vector.broadcast %3 : vector<32x1xi32> to vector<32x128xi32>
    %86 = arith.cmpi eq, %81, %85 : vector<32x128xi32>
    %87 = arith.extui %86 : vector<32x128xi1> to vector<32x128xi32>
    %88 = arith.sitofp %87 : vector<32x128xi32> to vector<32x128xf32>
    %89 = arith.truncf %88 : vector<32x128xf32> to vector<32x128xbf16>
    %c0_i32 = arith.constant 0 : i32
    %90 = vector.broadcast %c0_i32 : i32 to vector<32x128xi32>
    %91 = arith.cmpi eq, %81, %90 : vector<32x128xi32>
    %92 = arith.extui %91 : vector<32x128xi1> to vector<32x128xi32>
    %93 = arith.sitofp %92 : vector<32x128xi32> to vector<32x128xf32>
    %94 = arith.truncf %93 : vector<32x128xf32> to vector<32x128xbf16>
    %95 = vector.broadcast %84 : vector<32x1xbf16> to vector<32x128xbf16>
    %96 = arith.mulf %95, %94 : vector<32x128xbf16>
    %97 = arith.addf %89, %96 : vector<32x128xbf16>
    %98 = vector.broadcast %7 : vector<32x1xf32> to vector<32x128xf32>
    %99 = arith.mulf %50, %98 : vector<32x128xf32>
    %100 = arith.truncf %99 : vector<32x128xf32> to vector<32x128xbf16>
    %101 = vector.broadcast %8 : vector<32x1xf32> to vector<32x128xf32>
    %102 = arith.mulf %80, %101 : vector<32x128xf32>
    %103 = arith.truncf %102 : vector<32x128xf32> to vector<32x128xbf16>
    %104 = tpu.concatenate %100, %103, %97 in 1 : vector<32x128xbf16>, vector<32x128xbf16>, vector<32x128xbf16> -> vector<32x384xbf16>
    %c0_46 = arith.constant 0 : index
    %c0_47 = arith.constant 0 : index
    %105 = vector.load %arg11[%c0_46, %c0_47] : memref<384x128xbf16, #tpu.memory_space<vmem>>, vector<384x128xbf16>
    %cst_48 = arith.constant dense<0.000000e+00> : vector<32x128xf32>
    %106 = tpu.matmul %104, %105, %cst_48 {dimension_numbers = #tpu.dot_dimension_numbers<[1], [0], [0], [1], [0, 0, 1, 1], [], []>} : vector<32x384xbf16>, vector<384x128xbf16>, vector<32x128xf32> -> vector<32x128xf32>
    %c0_49 = arith.constant 0 : index
    %c0_50 = arith.constant 0 : index
    %107 = vector.load %arg12[%c0_49, %c0_50] : memref<1x128xf32, #tpu.memory_space<vmem>>, vector<1x128xf32>
    %108 = vector.broadcast %7 : vector<32x1xf32> to vector<32x128xf32>
    %109 = vector.broadcast %107 : vector<1x128xf32> to vector<32x128xf32>
    %110 = arith.mulf %108, %109 : vector<32x128xf32>
    %111 = arith.addf %106, %110 : vector<32x128xf32>
    %c0_51 = arith.constant 0 : index
    %c0_52 = arith.constant 0 : index
    %112 = vector.load %arg13[%c0_51, %c0_52] : memref<1x128xf32, #tpu.memory_space<vmem>>, vector<1x128xf32>
    %113 = vector.broadcast %8 : vector<32x1xf32> to vector<32x128xf32>
    %114 = vector.broadcast %112 : vector<1x128xf32> to vector<32x128xf32>
    %115 = arith.mulf %113, %114 : vector<32x128xf32>
    %116 = arith.addf %111, %115 : vector<32x128xf32>
    %c0_53 = arith.constant 0 : index
    %c0_54 = arith.constant 0 : index
    %117 = vector.load %arg14[%c0_53, %c0_54] : memref<32x128xf32, #tpu.memory_space<vmem>>, vector<32x128xf32>
    tpu.vector_store %arg14[%c0_53, %c0_54], %116 {strides = array<i32>} : memref<32x128xf32, #tpu.memory_space<vmem>>, vector<32x128xf32>,
    return
  }
  func.func @transform_0(%arg0: i32) -> (i32, i32) {
    %c0_i32 = arith.constant 0 : i32
    %c0_i32_0 = arith.constant 0 : i32
    return %arg0, %c0_i32 : i32, i32
  }
  func.func @transform_1(%arg0: i32) -> (i32, i32) {
    %c0_i32 = arith.constant 0 : i32
    %c0_i32_0 = arith.constant 0 : i32
    return %arg0, %c0_i32 : i32, i32
  }
  func.func @transform_2(%arg0: i32) -> (i32, i32) {
    %c0_i32 = arith.constant 0 : i32
    %c0_i32_0 = arith.constant 0 : i32
    %c0_i32_1 = arith.constant 0 : i32
    return %c0_i32, %c0_i32_0 : i32, i32
  }
  func.func @transform_3(%arg0: i32) -> (i32, i32) {
    %c0_i32 = arith.constant 0 : i32
    %c0_i32_0 = arith.constant 0 : i32
    %c0_i32_1 = arith.constant 0 : i32
    return %c0_i32, %c0_i32_0 : i32, i32
  }
  func.func @transform_4(%arg0: i32) -> (i32, i32, i32) {
    %c0_i32 = arith.constant 0 : i32
    %c0_i32_0 = arith.constant 0 : i32
    %c0_i32_1 = arith.constant 0 : i32
    %c0_i32_2 = arith.constant 0 : i32
    return %c0_i32, %c0_i32_0, %c0_i32_1 : i32, i32, i32
  }
  func.func @transform_5(%arg0: i32) -> (i32, i32, i32) {
    %c0_i32 = arith.constant 0 : i32
    %c0_i32_0 = arith.constant 0 : i32
    %c0_i32_1 = arith.constant 0 : i32
    %c0_i32_2 = arith.constant 0 : i32
    return %c0_i32, %c0_i32_0, %c0_i32_1 : i32, i32, i32
  }
  func.func @transform_6(%arg0: i32) -> (i32, i32) {
    %c0_i32 = arith.constant 0 : i32
    %c0_i32_0 = arith.constant 0 : i32
    %c0_i32_1 = arith.constant 0 : i32
    return %c0_i32, %c0_i32_0 : i32, i32
  }
  func.func @transform_7(%arg0: i32) -> (i32, i32) {
    %c0_i32 = arith.constant 0 : i32
    %c0_i32_0 = arith.constant 0 : i32
    %c0_i32_1 = arith.constant 0 : i32
    return %c0_i32, %c0_i32_0 : i32, i32
  }
  func.func @transform_8(%arg0: i32) -> (i32, i32, i32) {
    %c0_i32 = arith.constant 0 : i32
    %c0_i32_0 = arith.constant 0 : i32
    %c0_i32_1 = arith.constant 0 : i32
    %c0_i32_2 = arith.constant 0 : i32
    return %c0_i32, %c0_i32_0, %c0_i32_1 : i32, i32, i32
  }
  func.func @transform_9(%arg0: i32) -> (i32, i32, i32) {
    %c0_i32 = arith.constant 0 : i32
    %c0_i32_0 = arith.constant 0 : i32
    %c0_i32_1 = arith.constant 0 : i32
    %c0_i32_2 = arith.constant 0 : i32
    return %c0_i32, %c0_i32_0, %c0_i32_1 : i32, i32, i32
  }
  func.func @transform_10(%arg0: i32) -> (i32, i32) {
    %c0_i32 = arith.constant 0 : i32
    %c0_i32_0 = arith.constant 0 : i32
    %c0_i32_1 = arith.constant 0 : i32
    return %c0_i32, %c0_i32_0 : i32, i32
  }
  func.func @transform_11(%arg0: i32) -> (i32, i32) {
    %c0_i32 = arith.constant 0 : i32
    %c0_i32_0 = arith.constant 0 : i32
    %c0_i32_1 = arith.constant 0 : i32
    return %c0_i32, %c0_i32_0 : i32, i32
  }
  func.func @transform_12(%arg0: i32) -> (i32, i32) {
    %c0_i32 = arith.constant 0 : i32
    %c0_i32_0 = arith.constant 0 : i32
    %c0_i32_1 = arith.constant 0 : i32
    return %c0_i32, %c0_i32_0 : i32, i32
  }
  func.func @transform_13(%arg0: i32) -> (i32, i32) {
    %c0_i32 = arith.constant 0 : i32
    %c0_i32_0 = arith.constant 0 : i32
    return %arg0, %c0_i32 : i32, i32
  }
}

</mosaic_0001>

<llo_original>
// kernel: tpu_custom_call.1
$region0: #{tpu_custom_call.1}
  #allocation0 [shape = 'u32[]', space=smem, size = 0x4, offset = 0x4, fixed_abs, tag = 'smem constant byte address 0x4 - core index']
  #allocation1 [shape = 'u32[72,128]{1,0:T(1,128)}', space=vmem, size = 0x9000, scoped, tag = 'internal scratch']
  %s0 = inlined_call_operand.vmem [shape: f32[32,4], index: 0, kind: input, shape index: {}]
  %s1 = inlined_call_operand.vmem [shape: f32[32,2], index: 1, kind: input, shape index: {}]
  %s2 = inlined_call_operand.vmem [shape: f32[4,128], index: 2, kind: input, shape index: {}]
  %s3 = inlined_call_operand.vmem [shape: f32[1,128], index: 3, kind: input, shape index: {}]
  %s4 = inlined_call_operand.hbm [shape: bf16[2,128,128], index: 4, kind: input, shape index: {}]
  %s5 = inlined_call_operand.vmem [shape: f32[2,1,128], index: 5, kind: input, shape index: {}]
  %s6 = inlined_call_operand.vmem [shape: f32[1,128], index: 6, kind: input, shape index: {}]
  %s7 = inlined_call_operand.vmem [shape: f32[1,128], index: 7, kind: input, shape index: {}]
  %s8 = inlined_call_operand.hbm [shape: bf16[2,128,128], index: 8, kind: input, shape index: {}]
  %s9 = inlined_call_operand.vmem [shape: f32[2,1,128], index: 9, kind: input, shape index: {}]
  %s10 = inlined_call_operand.hbm [shape: bf16[384,128], index: 10, kind: input, shape index: {}]
  %s11 = inlined_call_operand.vmem [shape: f32[1,128], index: 11, kind: input, shape index: {}]
  %s12 = inlined_call_operand.vmem [shape: f32[1,128], index: 12, kind: input, shape index: {}]
  %s13 = inlined_call_operand.hbm [shape: f32[32,128], index: 13, kind: output, shape index: {}]
  %s14 = sld [smem:[#allocation0]]
  $region74: #{tpu_custom_call.1} parent=0
    _
  %s16 = ssub.s32 1, %s14
  %s17 = scalar_select 0, %s16, %s14
  $region1: #{tpu_custom_call.1} parent=0
    #allocation2 [shape = 'u8[65536]{0}', space=vmem, size = 0x10000, scoped, tag = 'input window, operand 4, single buffered']
    #allocation3 [shape = 's32[1]{0}', space=sflag, size = 0x4, scoped, tag = 'scoped memory for tpu_custom_call.1']
    #allocation4 [shape = 's32[1]{0}', space=sflag, size = 0x4, scoped, tag = 'scoped memory for tpu_custom_call.1']
    #allocation5 [shape = 'u8[65536]{0}', space=vmem, size = 0x10000, scoped, tag = 'input window, operand 8, single buffered']
    #allocation6 [shape = 's32[1]{0}', space=sflag, size = 0x4, scoped, tag = 'scoped memory for tpu_custom_call.1']
    #allocation7 [shape = 'u8[98304]{0}', space=vmem, size = 0x18000, scoped, tag = 'input window, operand 10, single buffered']
    #allocation8 [shape = 'u8[16384]{0}', space=vmem, size = 0x4000, scoped, tag = 'output window, operand 0, single buffered']
    %18 = vsyncpa [#allocation3], 0
    %19 = vsyncpa [#allocation6], 0
    %20 = vsyncpa [#allocation4], 0
    // Predicated region
    $region2: #{tpu_custom_call.1} parent=1 // pred_check
      _
    $region3: #{tpu_custom_call.1} parent=1 // pred_check_branch
      %22 = sbr.rel (0) target = $region5
    $region4: #{tpu_custom_call.1} parent=1 // pred_region
      _
    $region5: #{tpu_custom_call.1} parent=1 // pred_fallthru
      _
    // Predicated region
    $region6: #{tpu_custom_call.1} parent=1 // pred_check
      _
    $region7: #{tpu_custom_call.1} parent=1 // pred_check_branch
      %24 = sbr.rel (0) target = $region9
    $region8: #{tpu_custom_call.1} parent=1 // pred_region
      _
    $region9: #{tpu_custom_call.1} parent=1 // pred_fallthru
      _
    // Predicated region
    $region10: #{tpu_custom_call.1} parent=1 // pred_check
      _
    $region11: #{tpu_custom_call.1} parent=1 // pred_check_branch
      %26 = sbr.rel (0) target = $region13
    $region12: #{tpu_custom_call.1} parent=1 // pred_region
      _
    $region13: #{tpu_custom_call.1} parent=1 // pred_fallthru
      _
    // Predicated region
    $region14: #{tpu_custom_call.1} parent=1 // pred_check
      _
    $region15: #{tpu_custom_call.1} parent=1 // pred_check_branch
      %28 = sbr.rel (0) target = $region17
    $region16: #{tpu_custom_call.1} parent=1 // pred_region
      _
    $region17: #{tpu_custom_call.1} parent=1 // pred_fallthru
      _
    // Predicated region
    $region18: #{tpu_custom_call.1} parent=1 // pred_check
      _
    $region19: #{tpu_custom_call.1} parent=1 // pred_check_branch
      %30 = sbr.rel (0) target = $region21
    $region20: #{tpu_custom_call.1} parent=1 // pred_region
      %32 = vsyncadd [#allocation3], 0
      %s33 = sshll.u32 %s4, 4
      %s34 = int_to_ptr.hbm [resolvable:$true] %s33
      %s35 = sshll.u32 [#allocation2], 4
      %s36 = int_to_ptr.vmem [resolvable:$true] %s35
      %41 = dma.hbm_to_vmem [thread:$0]  %s34, 2048, %s36, [#allocation3], 64, 64, 4
    $region21: #{tpu_custom_call.1} parent=1 // pred_fallthru
      _
    // Predicated region
    $region22: #{tpu_custom_call.1} parent=1 // pred_check
      _
    $region23: #{tpu_custom_call.1} parent=1 // pred_check_branch
      %43 = sbr.rel (0) target = $region25
    $region24: #{tpu_custom_call.1} parent=1 // pred_region
      _
    $region25: #{tpu_custom_call.1} parent=1 // pred_fallthru
      _
    // Predicated region
    $region26: #{tpu_custom_call.1} parent=1 // pred_check
      _
    $region27: #{tpu_custom_call.1} parent=1 // pred_check_branch
      %45 = sbr.rel (0) target = $region29
    $region28: #{tpu_custom_call.1} parent=1 // pred_region
      _
    $region29: #{tpu_custom_call.1} parent=1 // pred_fallthru
      _
    // Predicated region
    $region30: #{tpu_custom_call.1} parent=1 // pred_check
      _
    $region31: #{tpu_custom_call.1} parent=1 // pred_check_branch
      %47 = sbr.rel (0) target = $region33
    $region32: #{tpu_custom_call.1} parent=1 // pred_region
      _
    $region33: #{tpu_custom_call.1} parent=1 // pred_fallthru
      _
    // Predicated region
    $region34: #{tpu_custom_call.1} parent=1 // pred_check
      _
    $region35: #{tpu_custom_call.1} parent=1 // pred_check_branch
      %49 = sbr.rel (0) target = $region37
    $region36: #{tpu_custom_call.1} parent=1 // pred_region
      %51 = vsyncadd [#allocation6], 0
      %s52 = sshll.u32 %s8, 4
      %s53 = int_to_ptr.hbm [resolvable:$true] %s52
      %s54 = sshll.u32 [#allocation5], 4
      %s55 = int_to_ptr.vmem [resolvable:$true] %s54
      %60 = dma.hbm_to_vmem [thread:$0]  %s53, 2048, %s55, [#allocation6], 64, 64, 4
    $region37: #{tpu_custom_call.1} parent=1 // pred_fallthru
      _
    // Predicated region
    $region38: #{tpu_custom_call.1} parent=1 // pred_check
      _
    $region39: #{tpu_custom_call.1} parent=1 // pred_check_branch
      %62 = sbr.rel (0) target = $region41
    $region40: #{tpu_custom_call.1} parent=1 // pred_region
      _
    $region41: #{tpu_custom_call.1} parent=1 // pred_fallthru
      _
    // Predicated region
    $region42: #{tpu_custom_call.1} parent=1 // pred_check
      _
    $region43: #{tpu_custom_call.1} parent=1 // pred_check_branch
      %64 = sbr.rel (0) target = $region45
    $region44: #{tpu_custom_call.1} parent=1 // pred_region
      %66 = vsyncadd [#allocation6], 0
      %s67 = sshll.u32 %s10, 4
      %s68 = int_to_ptr.hbm [resolvable:$true] %s67
      %s69 = sshll.u32 [#allocation7], 4
      %s70 = int_to_ptr.vmem [resolvable:$true] %s69
      %75 = dma.hbm_to_vmem [thread:$0]  %s68, 3072, %s70, [#allocation6], 64, 64, 4
    $region45: #{tpu_custom_call.1} parent=1 // pred_fallthru
      _
    // Predicated region
    $region46: #{tpu_custom_call.1} parent=1 // pred_check
      _
    $region47: #{tpu_custom_call.1} parent=1 // pred_check_branch
      %77 = sbr.rel (0) target = $region49
    $region48: #{tpu_custom_call.1} parent=1 // pred_region
      _
    $region49: #{tpu_custom_call.1} parent=1 // pred_fallthru
      _
    // Predicated region
    $region50: #{tpu_custom_call.1} parent=1 // pred_check
      _
    $region51: #{tpu_custom_call.1} parent=1 // pred_check_branch
      %79 = sbr.rel (0) target = $region53
    $region52: #{tpu_custom_call.1} parent=1 // pred_region
      _
    $region53: #{tpu_custom_call.1} parent=1 // pred_fallthru
      _
    // Predicated region
    $region54: #{tpu_custom_call.1} parent=1 // pred_check
      _
    $region55: #{tpu_custom_call.1} parent=1 // pred_check_branch
      %81 = sbr.rel (0) target = $region57
    $region56: #{tpu_custom_call.1} parent=1 // pred_region
      %83 = dma.done [#allocation3], 2048
    $region57: #{tpu_custom_call.1} parent=1 // pred_fallthru
      _
    // Predicated region
    $region58: #{tpu_custom_call.1} parent=1 // pred_check
      _
    $region59: #{tpu_custom_call.1} parent=1 // pred_check_branch
      %85 = sbr.rel (0) target = $region61
    $region60: #{tpu_custom_call.1} parent=1 // pred_region
      %87 = dma.done [#allocation6], 2048
    $region61: #{tpu_custom_call.1} parent=1 // pred_fallthru
      _
    // Predicated region
    $region62: #{tpu_custom_call.1} parent=1 // pred_check
      _
    $region63: #{tpu_custom_call.1} parent=1 // pred_check_branch
      %89 = sbr.rel (0) target = $region65
    $region64: #{tpu_custom_call.1} parent=1 // pred_region
      %91 = dma.done [#allocation6], 3072
    $region65: #{tpu_custom_call.1} parent=1 // pred_fallthru
      _
    %v92 = vld [vmem:[%s0] sm:$0xff]
    %v93 = vld [vmem:[%s0 + $0x8] sm:$0xff]
    %v94 = vld [vmem:[%s0 + $0x10] sm:$0xff]
    %v95 = vld [vmem:[%s0 + $0x18] sm:$0xff]
    %v96 = vld [vmem:[%s1] sm:$0xff]
    %v97 = vld [vmem:[%s1 + $0x8] sm:$0xff]
    %v98 = vld [vmem:[%s1 + $0x10] sm:$0xff]
    %v99 = vld [vmem:[%s1 + $0x18] sm:$0xff]
    %v100 = vcvt.f32.s32.to.zero.pseudo %v92
    %v101 = vcvt.f32.s32.to.zero.pseudo %v93
    %v102 = vcvt.f32.s32.to.zero.pseudo %v94
    %v103 = vcvt.f32.s32.to.zero.pseudo %v95
    %vm104 = vcmp.eq.s32.totalorder %v100, 1
    %vm105 = vcmp.eq.s32.totalorder %v101, 1
    %vm106 = vcmp.eq.s32.totalorder %v102, 1
    %vm107 = vcmp.eq.s32.totalorder %v103, 1
    %v108 = vsel %vm104, 1, 0
    %v109 = vsel %vm105, 1, 0
    %v110 = vsel %vm106, 1, 0
    %v111 = vsel %vm107, 1, 0
    %v112 = vcvt.s32.f32 %v108
    %v113 = vcvt.s32.f32 %v109
    %v114 = vcvt.s32.f32 %v110
    %v115 = vcvt.s32.f32 %v111
    %v116 = vld [vmem:[%s2 + $0x1] sm:$0x1]
    %118 = vset.pattern.permute.xlu0 1
    %119 = vperm.xlu0 %118, %v92
    %v120 = vpop.permute.xlu0 %119
    %123 = vset.pattern.permute.xlu0 1
    %124 = vperm.xlu0 %123, %v93
    %v125 = vpop.permute.xlu0 %124
    %128 = vset.pattern.permute.xlu0 1
    %129 = vperm.xlu0 %128, %v94
    %v130 = vpop.permute.xlu0 %129
    %133 = vset.pattern.permute.xlu0 1
    %134 = vperm.xlu0 %133, %v95
    %v135 = vpop.permute.xlu0 %134
    %v137 = vperm.slane %v116, 0
    %v138 = vmul.f32 %v120, %v137
    %v139 = vmul.f32 %v125, %v137
    %v140 = vmul.f32 %v130, %v137
    %v141 = vmul.f32 %v135, %v137
    %v142 = vld [vmem:[%s2 + $0x2] sm:$0x1]
    %143 = vset.pattern.permute.xlu0 2
    %144 = vperm.xlu0 %143, %v92
    %v145 = vpop.permute.xlu0 %144
    %147 = vset.pattern.permute.xlu0 2
    %148 = vperm.xlu0 %147, %v93
    %v149 = vpop.permute.xlu0 %148
    %151 = vset.pattern.permute.xlu0 2
    %152 = vperm.xlu0 %151, %v94
    %v153 = vpop.permute.xlu0 %152
    %155 = vset.pattern.permute.xlu0 2
    %156 = vperm.xlu0 %155, %v95
    %v157 = vpop.permute.xlu0 %156
    %v159 = vperm.slane %v142, 0
    %v160 = vmul.f32 %v145, %v159
    %v161 = vmul.f32 %v149, %v159
    %v162 = vmul.f32 %v153, %v159
    %v163 = vmul.f32 %v157, %v159
    %v164 = vadd.f32 %v138, %v160
    %v165 = vadd.f32 %v139, %v161
    %v166 = vadd.f32 %v140, %v162
    %v167 = vadd.f32 %v141, %v163
    %v168 = vld [vmem:[%s2 + $0x3] sm:$0x1]
    %169 = vset.pattern.permute.xlu0 3
    %170 = vperm.xlu0 %169, %v92
    %v171 = vpop.permute.xlu0 %170
    %173 = vset.pattern.permute.xlu0 3
    %174 = vperm.xlu0 %173, %v93
    %v175 = vpop.permute.xlu0 %174
    %177 = vset.pattern.permute.xlu0 3
    %178 = vperm.xlu0 %177, %v94
    %v179 = vpop.permute.xlu0 %178
    %181 = vset.pattern.permute.xlu0 3
    %182 = vperm.xlu0 %181, %v95
    %v183 = vpop.permute.xlu0 %182
    %v185 = vperm.slane %v168, 0
    %v186 = vmul.f32 %v171, %v185
    %v187 = vmul.f32 %v175, %v185
    %v188 = vmul.f32 %v179, %v185
    %v189 = vmul.f32 %v183, %v185
    %v190 = vadd.f32 %v164, %v186
    %v191 = vadd.f32 %v165, %v187
    %v192 = vadd.f32 %v166, %v188
    %v193 = vadd.f32 %v167, %v189
    %v194 = vld [vmem:[%s3] sm:$0x1]
    %v196 = vperm.slane %v194, 0
    %v198 = vadd.f32 %v190, %v196
    %v199 = vadd.f32 %v191, %v196
    %v200 = vadd.f32 %v192, %v196
    %v201 = vadd.f32 %v193, %v196
    %v202 = vmax.f32 %v198, 0.0
    %v203 = vmax.f32 %v199, 0.0
    %v204 = vmax.f32 %v200, 0.0
    %v205 = vmax.f32 %v201, 0.0
    %v206 = vpack.c.bf16 %v203, %v202
    %v207 = vpack.c.bf16 %v205, %v204
    %v208 = vld [vmem:[#allocation2] sm:$0xf]
    %v209 = vld [vmem:[#allocation2 + $0x4] sm:$0xf]
    %v210 = vld [vmem:[#allocation2 + $0x8] sm:$0xf]
    %v211 = vld [vmem:[#allocation2 + $0xc] sm:$0xf]
    %v212 = vld [vmem:[#allocation2 + $0x10] sm:$0xf]
    %v213 = vld [vmem:[#allocation2 + $0x14] sm:$0xf]
    %v214 = vld [vmem:[#allocation2 + $0x18] sm:$0xf]
    %v215 = vld [vmem:[#allocation2 + $0x1c] sm:$0xf]
    %v216 = vld [vmem:[#allocation2 + $0x20] sm:$0xf]
    %v217 = vld [vmem:[#allocation2 + $0x24] sm:$0xf]
    %v218 = vld [vmem:[#allocation2 + $0x28] sm:$0xf]
    %v219 = vld [vmem:[#allocation2 + $0x2c] sm:$0xf]
    %v220 = vld [vmem:[#allocation2 + $0x30] sm:$0xf]
    %v221 = vld [vmem:[#allocation2 + $0x34] sm:$0xf]
    %v222 = vld [vmem:[#allocation2 + $0x38] sm:$0xf]
    %v223 = vld [vmem:[#allocation2 + $0x3c] sm:$0xf]
    %v224 = vld [vmem:[%s5] sm:$0x1]
    %v226 = vperm.slane %v224, 0
    %v244 = vunpack.c.l.b16 %v208
    %v245 = vunpack.c.l.b16 %v209
    %v246 = vunpack.c.l.b16 %v210
    %v247 = vunpack.c.l.b16 %v211
    %v248 = vunpack.c.l.b16 %v212
    %v249 = vunpack.c.l.b16 %v213
    %v250 = vunpack.c.l.b16 %v214
    %v251 = vunpack.c.l.b16 %v215
    %v252 = vunpack.c.l.b16 %v216
    %v253 = vunpack.c.l.b16 %v217
    %v254 = vunpack.c.l.b16 %v218
    %v255 = vunpack.c.l.b16 %v219
    %v256 = vunpack.c.l.b16 %v220
    %v257 = vunpack.c.l.b16 %v221
    %v258 = vunpack.c.l.b16 %v222
    %v259 = vunpack.c.l.b16 %v223
    %v260 = vpack.c.b16 %v245, %v244
    %v261 = vpack.c.b16 %v247, %v246
    %v262 = vpack.c.b16 %v249, %v248
    %v263 = vpack.c.b16 %v251, %v250
    %v264 = vpack.c.b16 %v253, %v252
    %v265 = vpack.c.b16 %v255, %v254
    %v266 = vpack.c.b16 %v257, %v256
    %v267 = vpack.c.b16 %v259, %v258
    %276 = vmatpush.bf16.msra.mxu0 %v267
    %277 = vmatpush.bf16.msra.mxu0 %v266
    %278 = vmatpush.bf16.msra.mxu0 %v265
    %279 = vmatpush.bf16.msra.mxu0 %v264
    %280 = vmatpush.bf16.msra.mxu0 %v263
    %281 = vmatpush.bf16.msra.mxu0 %v262
    %282 = vmatpush.bf16.msra.mxu0 %v261
    %283 = vmatpush.bf16.msra.mxu0 %v260
    %284 = vmatmul.bf16.gmra.mxu0 %v206
    %v285 = vpop.f32.mrf.mxu0
    %v286 = vadd.f32 %v226, %v285
    %v287 = vpop.f32.mrf.mxu0
    %v288 = vadd.f32 %v226, %v287
    %289 = vmatmul.bf16.gmra.mxu0 %v207
    %v290 = vpop.f32.mrf.mxu0
    %v291 = vadd.f32 %v226, %v290
    %v292 = vpop.f32.mrf.mxu0
    %v293 = vadd.f32 %v226, %v292
    %294 = vdwg.mxu0
    %v295 = vmax.f32 %v286, 0.0
    %v296 = vmax.f32 %v288, 0.0
    %v297 = vmax.f32 %v291, 0.0
    %v298 = vmax.f32 %v293, 0.0
    %v299 = vpack.c.bf16 %v296, %v295
    %v300 = vpack.c.bf16 %v298, %v297
    %s301 = scalar_lea.vmem [#allocation2], 64
    %v302 = vld [vmem:[%s301] sm:$0xf]
    %v303 = vld [vmem:[%s301 + $0x4] sm:$0xf]
    %v304 = vld [vmem:[%s301 + $0x8] sm:$0xf]
    %v305 = vld [vmem:[%s301 + $0xc] sm:$0xf]
    %v306 = vld [vmem:[%s301 + $0x10] sm:$0xf]
    %v307 = vld [vmem:[%s301 + $0x14] sm:$0xf]
    %v308 = vld [vmem:[%s301 + $0x18] sm:$0xf]
    %v309 = vld [vmem:[%s301 + $0x1c] sm:$0xf]
    %v310 = vld [vmem:[%s301 + $0x20] sm:$0xf]
    %v311 = vld [vmem:[%s301 + $0x24] sm:$0xf]
    %v312 = vld [vmem:[%s301 + $0x28] sm:$0xf]
    %v313 = vld [vmem:[%s301 + $0x2c] sm:$0xf]
    %v314 = vld [vmem:[%s301 + $0x30] sm:$0xf]
    %v315 = vld [vmem:[%s301 + $0x34] sm:$0xf]
    %v316 = vld [vmem:[%s301 + $0x38] sm:$0xf]
    %v317 = vld [vmem:[%s301 + $0x3c] sm:$0xf]
    %s318 = scalar_lea.vmem %s5, 1
    %v319 = vld [vmem:[%s318] sm:$0x1]
    %v321 = vperm.slane %v319, 0
    %v339 = vunpack.c.l.b16 %v302
    %v340 = vunpack.c.l.b16 %v303
    %v341 = vunpack.c.l.b16 %v304
    %v342 = vunpack.c.l.b16 %v305
    %v343 = vunpack.c.l.b16 %v306
    %v344 = vunpack.c.l.b16 %v307
    %v345 = vunpack.c.l.b16 %v308
    %v346 = vunpack.c.l.b16 %v309
    %v347 = vunpack.c.l.b16 %v310
    %v348 = vunpack.c.l.b16 %v311
    %v349 = vunpack.c.l.b16 %v312
    %v350 = vunpack.c.l.b16 %v313
    %v351 = vunpack.c.l.b16 %v314
    %v352 = vunpack.c.l.b16 %v315
    %v353 = vunpack.c.l.b16 %v316
    %v354 = vunpack.c.l.b16 %v317
    %v355 = vpack.c.b16 %v340, %v339
    %v356 = vpack.c.b16 %v342, %v341
    %v357 = vpack.c.b16 %v344, %v343
    %v358 = vpack.c.b16 %v346, %v345
    %v359 = vpack.c.b16 %v348, %v347
    %v360 = vpack.c.b16 %v350, %v349
    %v361 = vpack.c.b16 %v352, %v351
    %v362 = vpack.c.b16 %v354, %v353
    %371 = vmatpush.bf16.msra.mxu0 %v362
    %372 = vmatpush.bf16.msra.mxu0 %v361
    %373 = vmatpush.bf16.msra.mxu0 %v360
    %374 = vmatpush.bf16.msra.mxu0 %v359
    %375 = vmatpush.bf16.msra.mxu0 %v358
    %376 = vmatpush.bf16.msra.mxu0 %v357
    %377 = vmatpush.bf16.msra.mxu0 %v356
    %378 = vmatpush.bf16.msra.mxu0 %v355
    %379 = vmatmul.bf16.gmra.mxu0 %v299
    %v380 = vpop.f32.mrf.mxu0
    %v381 = vadd.f32 %v321, %v380
    %v382 = vpop.f32.mrf.mxu0
    %v383 = vadd.f32 %v321, %v382
    %384 = vmatmul.bf16.gmra.mxu0 %v300
    %v385 = vpop.f32.mrf.mxu0
    %v386 = vadd.f32 %v321, %v385
    %v387 = vpop.f32.mrf.mxu0
    %v388 = vadd.f32 %v321, %v387
    %389 = vdwg.mxu0
    %v390 = vmax.f32 %v381, 0.0
    %v391 = vmax.f32 %v383, 0.0
    %v392 = vmax.f32 %v386, 0.0
    %v393 = vmax.f32 %v388, 0.0
    %v394 = vld [vmem:[%s6] sm:$0x1]
    %396 = vset.pattern.permute.xlu0 0
    %397 = vperm.xlu0 %396, %v96
    %v398 = vpop.permute.xlu0 %397
    %401 = vset.pattern.permute.xlu0 0
    %402 = vperm.xlu0 %401, %v97
    %v403 = vpop.permute.xlu0 %402
    %406 = vset.pattern.permute.xlu0 0
    %407 = vperm.xlu0 %406, %v98
    %v408 = vpop.permute.xlu0 %407
    %411 = vset.pattern.permute.xlu0 0
    %412 = vperm.xlu0 %411, %v99
    %v413 = vpop.permute.xlu0 %412
    %v416 = vperm.slane %v394, 0
    %v418 = vmul.f32 %v398, %v416
    %v419 = vmul.f32 %v403, %v416
    %v420 = vmul.f32 %v408, %v416
    %v421 = vmul.f32 %v413, %v416
    %v422 = vld [vmem:[%s7] sm:$0x1]
    %v424 = vperm.slane %v422, 0
    %v426 = vadd.f32 %v418, %v424
    %v427 = vadd.f32 %v419, %v424
    %v428 = vadd.f32 %v420, %v424
    %v429 = vadd.f32 %v421, %v424
    %v430 = vmax.f32 %v426, 0.0
    %v431 = vmax.f32 %v427, 0.0
    %v432 = vmax.f32 %v428, 0.0
    %v433 = vmax.f32 %v429, 0.0
    %v434 = vpack.c.bf16 %v431, %v430
    %v435 = vpack.c.bf16 %v433, %v432
    %v436 = vld [vmem:[#allocation5] sm:$0xf]
    %v437 = vld [vmem:[#allocation5 + $0x4] sm:$0xf]
    %v438 = vld [vmem:[#allocation5 + $0x8] sm:$0xf]
    %v439 = vld [vmem:[#allocation5 + $0xc] sm:$0xf]
    %v440 = vld [vmem:[#allocation5 + $0x10] sm:$0xf]
    %v441 = vld [vmem:[#allocation5 + $0x14] sm:$0xf]
    %v442 = vld [vmem:[#allocation5 + $0x18] sm:$0xf]
    %v443 = vld [vmem:[#allocation5 + $0x1c] sm:$0xf]
    %v444 = vld [vmem:[#allocation5 + $0x20] sm:$0xf]
    %v445 = vld [vmem:[#allocation5 + $0x24] sm:$0xf]
    %v446 = vld [vmem:[#allocation5 + $0x28] sm:$0xf]
    %v447 = vld [vmem:[#allocation5 + $0x2c] sm:$0xf]
    %v448 = vld [vmem:[#allocation5 + $0x30] sm:$0xf]
    %v449 = vld [vmem:[#allocation5 + $0x34] sm:$0xf]
    %v450 = vld [vmem:[#allocation5 + $0x38] sm:$0xf]
    %v451 = vld [vmem:[#allocation5 + $0x3c] sm:$0xf]
    %v452 = vld [vmem:[%s9] sm:$0x1]
    %v454 = vperm.slane %v452, 0
    %v472 = vunpack.c.l.b16 %v436
    %v473 = vunpack.c.l.b16 %v437
    %v474 = vunpack.c.l.b16 %v438
    %v475 = vunpack.c.l.b16 %v439
    %v476 = vunpack.c.l.b16 %v440
    %v477 = vunpack.c.l.b16 %v441
    %v478 = vunpack.c.l.b16 %v442
    %v479 = vunpack.c.l.b16 %v443
    %v480 = vunpack.c.l.b16 %v444
    %v481 = vunpack.c.l.b16 %v445
    %v482 = vunpack.c.l.b16 %v446
    %v483 = vunpack.c.l.b16 %v447
    %v484 = vunpack.c.l.b16 %v448
    %v485 = vunpack.c.l.b16 %v449
    %v486 = vunpack.c.l.b16 %v450
    %v487 = vunpack.c.l.b16 %v451
    %v488 = vpack.c.b16 %v473, %v472
    %v489 = vpack.c.b16 %v475, %v474
    %v490 = vpack.c.b16 %v477, %v476
    %v491 = vpack.c.b16 %v479, %v478
    %v492 = vpack.c.b16 %v481, %v480
    %v493 = vpack.c.b16 %v483, %v482
    %v494 = vpack.c.b16 %v485, %v484
    %v495 = vpack.c.b16 %v487, %v486
    %504 = vmatpush.bf16.msra.mxu0 %v495
    %505 = vmatpush.bf16.msra.mxu0 %v494
    %506 = vmatpush.bf16.msra.mxu0 %v493
    %507 = vmatpush.bf16.msra.mxu0 %v492
    %508 = vmatpush.bf16.msra.mxu0 %v491
    %509 = vmatpush.bf16.msra.mxu0 %v490
    %510 = vmatpush.bf16.msra.mxu0 %v489
    %511 = vmatpush.bf16.msra.mxu0 %v488
    %512 = vmatmul.bf16.gmra.mxu0 %v434
    %v513 = vpop.f32.mrf.mxu0
    %v514 = vadd.f32 %v454, %v513
    %v515 = vpop.f32.mrf.mxu0
    %v516 = vadd.f32 %v454, %v515
    %517 = vmatmul.bf16.gmra.mxu0 %v435
    %v518 = vpop.f32.mrf.mxu0
    %v519 = vadd.f32 %v454, %v518
    %v520 = vpop.f32.mrf.mxu0
    %v521 = vadd.f32 %v454, %v520
    %522 = vdwg.mxu0
    %v523 = vmax.f32 %v514, 0.0
    %v524 = vmax.f32 %v516, 0.0
    %v525 = vmax.f32 %v519, 0.0
    %v526 = vmax.f32 %v521, 0.0
    %v527 = vpack.c.bf16 %v524, %v523
    %v528 = vpack.c.bf16 %v526, %v525
    %s529 = scalar_lea.vmem [#allocation5], 64
    %v530 = vld [vmem:[%s529] sm:$0xf]
    %v531 = vld [vmem:[%s529 + $0x4] sm:$0xf]
    %v532 = vld [vmem:[%s529 + $0x8] sm:$0xf]
    %v533 = vld [vmem:[%s529 + $0xc] sm:$0xf]
    %v534 = vld [vmem:[%s529 + $0x10] sm:$0xf]
    %v535 = vld [vmem:[%s529 + $0x14] sm:$0xf]
    %v536 = vld [vmem:[%s529 + $0x18] sm:$0xf]
    %v537 = vld [vmem:[%s529 + $0x1c] sm:$0xf]
    %v538 = vld [vmem:[%s529 + $0x20] sm:$0xf]
    %v539 = vld [vmem:[%s529 + $0x24] sm:$0xf]
    %v540 = vld [vmem:[%s529 + $0x28] sm:$0xf]
    %v541 = vld [vmem:[%s529 + $0x2c] sm:$0xf]
    %v542 = vld [vmem:[%s529 + $0x30] sm:$0xf]
    %v543 = vld [vmem:[%s529 + $0x34] sm:$0xf]
    %v544 = vld [vmem:[%s529 + $0x38] sm:$0xf]
    %v545 = vld [vmem:[%s529 + $0x3c] sm:$0xf]
    %s546 = scalar_lea.vmem %s9, 1
    %v547 = vld [vmem:[%s546] sm:$0x1]
    %v549 = vperm.slane %v547, 0
    %v567 = vunpack.c.l.b16 %v530
    %v568 = vunpack.c.l.b16 %v531
    %v569 = vunpack.c.l.b16 %v532
    %v570 = vunpack.c.l.b16 %v533
    %v571 = vunpack.c.l.b16 %v534
    %v572 = vunpack.c.l.b16 %v535
    %v573 = vunpack.c.l.b16 %v536
    %v574 = vunpack.c.l.b16 %v537
    %v575 = vunpack.c.l.b16 %v538
    %v576 = vunpack.c.l.b16 %v539
    %v577 = vunpack.c.l.b16 %v540
    %v578 = vunpack.c.l.b16 %v541
    %v579 = vunpack.c.l.b16 %v542
    %v580 = vunpack.c.l.b16 %v543
    %v581 = vunpack.c.l.b16 %v544
    %v582 = vunpack.c.l.b16 %v545
    %v583 = vpack.c.b16 %v568, %v567
    %v584 = vpack.c.b16 %v570, %v569
    %v585 = vpack.c.b16 %v572, %v571
    %v586 = vpack.c.b16 %v574, %v573
    %v587 = vpack.c.b16 %v576, %v575
    %v588 = vpack.c.b16 %v578, %v577
    %v589 = vpack.c.b16 %v580, %v579
    %v590 = vpack.c.b16 %v582, %v581
    %599 = vmatpush.bf16.msra.mxu0 %v590
    %600 = vmatpush.bf16.msra.mxu0 %v589
    %601 = vmatpush.bf16.msra.mxu0 %v588
    %602 = vmatpush.bf16.msra.mxu0 %v587
    %603 = vmatpush.bf16.msra.mxu0 %v586
    %604 = vmatpush.bf16.msra.mxu0 %v585
    %605 = vmatpush.bf16.msra.mxu0 %v584
    %606 = vmatpush.bf16.msra.mxu0 %v583
    %607 = vmatmul.bf16.gmra.mxu0 %v527
    %v608 = vpop.f32.mrf.mxu0
    %v609 = vadd.f32 %v549, %v608
    %v610 = vpop.f32.mrf.mxu0
    %v611 = vadd.f32 %v549, %v610
    %612 = vmatmul.bf16.gmra.mxu0 %v528
    %v613 = vpop.f32.mrf.mxu0
    %v614 = vadd.f32 %v549, %v613
    %v615 = vpop.f32.mrf.mxu0
    %v616 = vadd.f32 %v549, %v615
    %617 = vdwg.mxu0
    %v618 = vmax.f32 %v609, 0.0
    %v619 = vmax.f32 %v611, 0.0
    %v620 = vmax.f32 %v614, 0.0
    %v621 = vmax.f32 %v616, 0.0
    %v622 = vlaneseq
    %v623 = vand.u32 %v622, 127
    %v624 = vsub.f32 1.0, %v96
    %v625 = vsub.f32 1.0, %v97
    %v626 = vsub.f32 1.0, %v98
    %v627 = vsub.f32 1.0, %v99
    %v628 = vpack.c.bf16 %v624, %v624
    %v629 = vpack.c.bf16 %v625, %v625
    %v630 = vpack.c.bf16 %v626, %v626
    %v631 = vpack.c.bf16 %v627, %v627
    %632 = vset.pattern.permute.xlu0 0
    %633 = vperm.xlu0 %632, %v100
    %v634 = vpop.permute.xlu0 %633
    %635 = vset.pattern.permute.xlu0 0
    %636 = vperm.xlu0 %635, %v101
    %v637 = vpop.permute.xlu0 %636
    %638 = vset.pattern.permute.xlu0 0
    %639 = vperm.xlu0 %638, %v102
    %v640 = vpop.permute.xlu0 %639
    %641 = vset.pattern.permute.xlu0 0
    %642 = vperm.xlu0 %641, %v103
    %v643 = vpop.permute.xlu0 %642
    %vm644 = vcmp.eq.s32.totalorder %v623, %v634
    %vm645 = vcmp.eq.s32.totalorder %v623, %v637
    %vm646 = vcmp.eq.s32.totalorder %v623, %v640
    %vm647 = vcmp.eq.s32.totalorder %v623, %v643
    %v648 = vsel %vm644, 1, 0
    %v649 = vsel %vm645, 1, 0
    %v650 = vsel %vm646, 1, 0
    %v651 = vsel %vm647, 1, 0
    %v652 = vcvt.s32.f32 %v648
    %v653 = vcvt.s32.f32 %v649
    %v654 = vcvt.s32.f32 %v650
    %v655 = vcvt.s32.f32 %v651
    %v656 = vpack.c.bf16 %v652, %v652
    %v657 = vpack.c.bf16 %v653, %v653
    %v658 = vpack.c.bf16 %v654, %v654
    %v659 = vpack.c.bf16 %v655, %v655
    %vm660 = vcmp.eq.s32.totalorder %v623, 0
    %v661 = vsel %vm660, 1, 0
    %v662 = vcvt.s32.f32 %v661
    %v663 = vpack.c.bf16 %v662, %v662
    %665 = vset.pattern.permute.xlu0 1
    %666 = vperm.xlu0 %665, %v628
    %v667 = vpop.permute.xlu0 %666
    %v670 = vunpack.c.l.s4 839922192
    %v671 = vunpack.c.0.s8 %v670
    %v672 = vperm.slane %v667, %v671
    %674 = vset.pattern.permute.xlu0 1
    %675 = vperm.xlu0 %674, %v629
    %v676 = vpop.permute.xlu0 %675
    %v679 = vunpack.c.l.s4 839922192
    %v680 = vunpack.c.0.s8 %v679
    %v681 = vperm.slane %v676, %v680
    %683 = vset.pattern.permute.xlu0 1
    %684 = vperm.xlu0 %683, %v630
    %v685 = vpop.permute.xlu0 %684
    %v688 = vunpack.c.l.s4 839922192
    %v689 = vunpack.c.0.s8 %v688
    %v690 = vperm.slane %v685, %v689
    %692 = vset.pattern.permute.xlu0 1
    %693 = vperm.xlu0 %692, %v631
    %v694 = vpop.permute.xlu0 %693
    %v697 = vunpack.c.l.s4 839922192
    %v698 = vunpack.c.0.s8 %v697
    %v699 = vperm.slane %v694, %v698
    %v700 = vunpack.c.l.bf16 %v672
    %v701 = vunpack.c.l.bf16 %v681
    %v702 = vunpack.c.l.bf16 %v690
    %v703 = vunpack.c.l.bf16 %v699
    %v704 = vunpack.c.l.bf16 %v663
    %v705 = vmul.f32 %v700, %v704
    %v706 = vmul.f32 %v701, %v704
    %v707 = vmul.f32 %v702, %v704
    %v708 = vmul.f32 %v703, %v704
    %v709 = vpack.c.bf16 %v705, %v705
    %v710 = vpack.c.bf16 %v706, %v706
    %v711 = vpack.c.bf16 %v707, %v707
    %v712 = vpack.c.bf16 %v708, %v708
    %v713 = vunpack.c.l.bf16 %v656
    %v714 = vunpack.c.l.bf16 %v657
    %v715 = vunpack.c.l.bf16 %v658
    %v716 = vunpack.c.l.bf16 %v659
    %v717 = vunpack.c.l.bf16 %v709
    %v718 = vunpack.c.l.bf16 %v710
    %v719 = vunpack.c.l.bf16 %v711
    %v720 = vunpack.c.l.bf16 %v712
    %v721 = vadd.f32 %v713, %v717
    %v722 = vadd.f32 %v714, %v718
    %v723 = vadd.f32 %v715, %v719
    %v724 = vadd.f32 %v716, %v720
    %v725 = vpack.c.bf16 %v721, %v721
    %v726 = vpack.c.bf16 %v722, %v722
    %v727 = vpack.c.bf16 %v723, %v723
    %v728 = vpack.c.bf16 %v724, %v724
    %730 = vset.pattern.permute.xlu0 0
    %731 = vperm.xlu0 %730, %v112
    %v732 = vpop.permute.xlu0 %731
    %735 = vset.pattern.permute.xlu0 0
    %736 = vperm.xlu0 %735, %v113
    %v737 = vpop.permute.xlu0 %736
    %740 = vset.pattern.permute.xlu0 0
    %741 = vperm.xlu0 %740, %v114
    %v742 = vpop.permute.xlu0 %741
    %745 = vset.pattern.permute.xlu0 0
    %746 = vperm.xlu0 %745, %v115
    %v747 = vpop.permute.xlu0 %746
    %v749 = vmul.f32 %v390, %v732
    %v750 = vmul.f32 %v391, %v737
    %v751 = vmul.f32 %v392, %v742
    %v752 = vmul.f32 %v393, %v747
    %v753 = vpack.c.bf16 %v749, %v749
    %v754 = vpack.c.bf16 %v750, %v750
    %v755 = vpack.c.bf16 %v751, %v751
    %v756 = vpack.c.bf16 %v752, %v752
    %757 = vset.pattern.permute.xlu0 1
    %758 = vperm.xlu0 %757, %v96
    %v759 = vpop.permute.xlu0 %758
    %761 = vset.pattern.permute.xlu0 1
    %762 = vperm.xlu0 %761, %v97
    %v763 = vpop.permute.xlu0 %762
    %765 = vset.pattern.permute.xlu0 1
    %766 = vperm.xlu0 %765, %v98
    %v767 = vpop.permute.xlu0 %766
    %769 = vset.pattern.permute.xlu0 1
    %770 = vperm.xlu0 %769, %v99
    %v771 = vpop.permute.xlu0 %770
    %v773 = vmul.f32 %v618, %v759
    %v774 = vmul.f32 %v619, %v763
    %v775 = vmul.f32 %v620, %v767
    %v776 = vmul.f32 %v621, %v771
    %v777 = vpack.c.bf16 %v773, %v773
    %v778 = vpack.c.bf16 %v774, %v774
    %v779 = vpack.c.bf16 %v775, %v775
    %v780 = vpack.c.bf16 %v776, %v776
    %v785 = vunpack.c.l.b16 %v753
    %v786 = vunpack.c.l.b16 %v754
    %v787 = vunpack.c.l.b16 %v755
    %v788 = vunpack.c.l.b16 %v756
    %v789 = vpack.c.b16 %v786, %v785
    %v790 = vpack.c.b16 %v788, %v787
    %v797 = vunpack.c.l.b16 %v777
    %v798 = vunpack.c.l.b16 %v778
    %v799 = vunpack.c.l.b16 %v779
    %v800 = vunpack.c.l.b16 %v780
    %v801 = vpack.c.b16 %v798, %v797
    %v802 = vpack.c.b16 %v800, %v799
    %v809 = vunpack.c.l.b16 %v725
    %v810 = vunpack.c.l.b16 %v726
    %v811 = vunpack.c.l.b16 %v727
    %v812 = vunpack.c.l.b16 %v728
    %v813 = vpack.c.b16 %v810, %v809
    %v814 = vpack.c.b16 %v812, %v811
    %v817 = vld [vmem:[#allocation7] sm:$0xf]
    %v818 = vld [vmem:[#allocation7 + $0x4] sm:$0xf]
    %v819 = vld [vmem:[#allocation7 + $0x8] sm:$0xf]
    %v820 = vld [vmem:[#allocation7 + $0xc] sm:$0xf]
    %v821 = vld [vmem:[#allocation7 + $0x10] sm:$0xf]
    %v822 = vld [vmem:[#allocation7 + $0x14] sm:$0xf]
    %v823 = vld [vmem:[#allocation7 + $0x18] sm:$0xf]
    %v824 = vld [vmem:[#allocation7 + $0x1c] sm:$0xf]
    %v825 = vld [vmem:[#allocation7 + $0x20] sm:$0xf]
    %v826 = vld [vmem:[#allocation7 + $0x24] sm:$0xf]
    %v827 = vld [vmem:[#allocation7 + $0x28] sm:$0xf]
    %v828 = vld [vmem:[#allocation7 + $0x2c] sm:$0xf]
    %v829 = vld [vmem:[#allocation7 + $0x30] sm:$0xf]
    %v830 = vld [vmem:[#allocation7 + $0x34] sm:$0xf]
    %v831 = vld [vmem:[#allocation7 + $0x38] sm:$0xf]
    %v832 = vld [vmem:[#allocation7 + $0x3c] sm:$0xf]
    %v833 = vld [vmem:[#allocation7 + $0x40] sm:$0xf]
    %v834 = vld [vmem:[#allocation7 + $0x44] sm:$0xf]
    %v835 = vld [vmem:[#allocation7 + $0x48] sm:$0xf]
    %v836 = vld [vmem:[#allocation7 + $0x4c] sm:$0xf]
    %v837 = vld [vmem:[#allocation7 + $0x50] sm:$0xf]
    %v838 = vld [vmem:[#allocation7 + $0x54] sm:$0xf]
    %v839 = vld [vmem:[#allocation7 + $0x58] sm:$0xf]
    %v840 = vld [vmem:[#allocation7 + $0x5c] sm:$0xf]
    %v841 = vld [vmem:[#allocation7 + $0x60] sm:$0xf]
    %v842 = vld [vmem:[#allocation7 + $0x64] sm:$0xf]
    %v843 = vld [vmem:[#allocation7 + $0x68] sm:$0xf]
    %v844 = vld [vmem:[#allocation7 + $0x6c] sm:$0xf]
    %v845 = vld [vmem:[#allocation7 + $0x70] sm:$0xf]
    %v846 = vld [vmem:[#allocation7 + $0x74] sm:$0xf]
    %v847 = vld [vmem:[#allocation7 + $0x78] sm:$0xf]
    %v848 = vld [vmem:[#allocation7 + $0x7c] sm:$0xf]
    %v849 = vld [vmem:[#allocation7 + $0x80] sm:$0xf]
    %v850 = vld [vmem:[#allocation7 + $0x84] sm:$0xf]
    %v851 = vld [vmem:[#allocation7 + $0x88] sm:$0xf]
    %v852 = vld [vmem:[#allocation7 + $0x8c] sm:$0xf]
    %v853 = vld [vmem:[#allocation7 + $0x90] sm:$0xf]
    %v854 = vld [vmem:[#allocation7 + $0x94] sm:$0xf]
    %v855 = vld [vmem:[#allocation7 + $0x98] sm:$0xf]
    %v856 = vld [vmem:[#allocation7 + $0x9c] sm:$0xf]
    %v857 = vld [vmem:[#allocation7 + $0xa0] sm:$0xf]
    %v858 = vld [vmem:[#allocation7 + $0xa4] sm:$0xf]
    %v859 = vld [vmem:[#allocation7 + $0xa8] sm:$0xf]
    %v860 = vld [vmem:[#allocation7 + $0xac] sm:$0xf]
    %v861 = vld [vmem:[#allocation7 + $0xb0] sm:$0xf]
    %v862 = vld [vmem:[#allocation7 + $0xb4] sm:$0xf]
    %v863 = vld [vmem:[#allocation7 + $0xb8] sm:$0xf]
    %v864 = vld [vmem:[#allocation7 + $0xbc] sm:$0xf]
    %v865 = vld [vmem:[%s11] sm:$0x1]
    %v867 = vperm.slane %v865, 0
    %v869 = vmul.f32 %v732, %v867
    %v870 = vmul.f32 %v737, %v867
    %v871 = vmul.f32 %v742, %v867
    %v872 = vmul.f32 %v747, %v867
    %v921 = vunpack.c.l.b16 %v817
    %v922 = vunpack.c.l.b16 %v818
    %v923 = vunpack.c.l.b16 %v819
    %v924 = vunpack.c.l.b16 %v820
    %v925 = vunpack.c.l.b16 %v821
    %v926 = vunpack.c.l.b16 %v822
    %v927 = vunpack.c.l.b16 %v823
    %v928 = vunpack.c.l.b16 %v824
    %v929 = vunpack.c.l.b16 %v825
    %v930 = vunpack.c.l.b16 %v826
    %v931 = vunpack.c.l.b16 %v827
    %v932 = vunpack.c.l.b16 %v828
    %v933 = vunpack.c.l.b16 %v829
    %v934 = vunpack.c.l.b16 %v830
    %v935 = vunpack.c.l.b16 %v831
    %v936 = vunpack.c.l.b16 %v832
    %v937 = vunpack.c.l.b16 %v833
    %v938 = vunpack.c.l.b16 %v834
    %v939 = vunpack.c.l.b16 %v835
    %v940 = vunpack.c.l.b16 %v836
    %v941 = vunpack.c.l.b16 %v837
    %v942 = vunpack.c.l.b16 %v838
    %v943 = vunpack.c.l.b16 %v839
    %v944 = vunpack.c.l.b16 %v840
    %v945 = vunpack.c.l.b16 %v841
    %v946 = vunpack.c.l.b16 %v842
    %v947 = vunpack.c.l.b16 %v843
    %v948 = vunpack.c.l.b16 %v844
    %v949 = vunpack.c.l.b16 %v845
    %v950 = vunpack.c.l.b16 %v846
    %v951 = vunpack.c.l.b16 %v847
    %v952 = vunpack.c.l.b16 %v848
    %v953 = vunpack.c.l.b16 %v849
    %v954 = vunpack.c.l.b16 %v850
    %v955 = vunpack.c.l.b16 %v851
    %v956 = vunpack.c.l.b16 %v852
    %v957 = vunpack.c.l.b16 %v853
    %v958 = vunpack.c.l.b16 %v854
    %v959 = vunpack.c.l.b16 %v855
    %v960 = vunpack.c.l.b16 %v856
    %v961 = vunpack.c.l.b16 %v857
    %v962 = vunpack.c.l.b16 %v858
    %v963 = vunpack.c.l.b16 %v859
    %v964 = vunpack.c.l.b16 %v860
    %v965 = vunpack.c.l.b16 %v861
    %v966 = vunpack.c.l.b16 %v862
    %v967 = vunpack.c.l.b16 %v863
    %v968 = vunpack.c.l.b16 %v864
    %v969 = vpack.c.b16 %v922, %v921
    %v970 = vpack.c.b16 %v924, %v923
    %v971 = vpack.c.b16 %v926, %v925
    %v972 = vpack.c.b16 %v928, %v927
    %v973 = vpack.c.b16 %v930, %v929
    %v974 = vpack.c.b16 %v932, %v931
    %v975 = vpack.c.b16 %v934, %v933
    %v976 = vpack.c.b16 %v936, %v935
    %v977 = vpack.c.b16 %v938, %v937
    %v978 = vpack.c.b16 %v940, %v939
    %v979 = vpack.c.b16 %v942, %v941
    %v980 = vpack.c.b16 %v944, %v943
    %v981 = vpack.c.b16 %v946, %v945
    %v982 = vpack.c.b16 %v948, %v947
    %v983 = vpack.c.b16 %v950, %v949
    %v984 = vpack.c.b16 %v952, %v951
    %v985 = vpack.c.b16 %v954, %v953
    %v986 = vpack.c.b16 %v956, %v955
    %v987 = vpack.c.b16 %v958, %v957
    %v988 = vpack.c.b16 %v960, %v959
    %v989 = vpack.c.b16 %v962, %v961
    %v990 = vpack.c.b16 %v964, %v963
    %v991 = vpack.c.b16 %v966, %v965
    %v992 = vpack.c.b16 %v968, %v967
    %1017 = vmatpush.bf16.msra.mxu0 %v976
    %1018 = vmatpush.bf16.msra.mxu0 %v975
    %1019 = vmatpush.bf16.msra.mxu0 %v974
    %1020 = vmatpush.bf16.msra.mxu0 %v973
    %1021 = vmatpush.bf16.msra.mxu0 %v972
    %1022 = vmatpush.bf16.msra.mxu0 %v971
    %1023 = vmatpush.bf16.msra.mxu0 %v970
    %1024 = vmatpush.bf16.msra.mxu0 %v969
    %1025 = vmatmul.bf16.gmra.mxu0 %v789
    %v1026 = vpop.f32.mrf.mxu0
    %v1027 = vadd.f32 %v869, %v1026
    %v1028 = vpop.f32.mrf.mxu0
    %v1029 = vadd.f32 %v870, %v1028
    %1030 = vmatmul.bf16.gmra.mxu0 %v790
    %v1031 = vpop.f32.mrf.mxu0
    %v1032 = vadd.f32 %v871, %v1031
    %v1033 = vpop.f32.mrf.mxu0
    %v1034 = vadd.f32 %v872, %v1033
    %1035 = vdwg.mxu0
    %1036 = vmatpush.bf16.msra.mxu0 %v984
    %1037 = vmatpush.bf16.msra.mxu0 %v983
    %1038 = vmatpush.bf16.msra.mxu0 %v982
    %1039 = vmatpush.bf16.msra.mxu0 %v981
    %1040 = vmatpush.bf16.msra.mxu0 %v980
    %1041 = vmatpush.bf16.msra.mxu0 %v979
    %1042 = vmatpush.bf16.msra.mxu0 %v978
    %1043 = vmatpush.bf16.msra.mxu0 %v977
    %1044 = vmatmul.bf16.gmra.mxu0 %v801
    %v1045 = vpop.f32.mrf.mxu0
    %v1046 = vadd.f32 %v1027, %v1045
    %v1047 = vpop.f32.mrf.mxu0
    %v1048 = vadd.f32 %v1029, %v1047
    %1049 = vmatmul.bf16.gmra.mxu0 %v802
    %v1050 = vpop.f32.mrf.mxu0
    %v1051 = vadd.f32 %v1032, %v1050
    %v1052 = vpop.f32.mrf.mxu0
    %v1053 = vadd.f32 %v1034, %v1052
    %1054 = vdwg.mxu0
    %1055 = vmatpush.bf16.msra.mxu0 %v992
    %1056 = vmatpush.bf16.msra.mxu0 %v991
    %1057 = vmatpush.bf16.msra.mxu0 %v990
    %1058 = vmatpush.bf16.msra.mxu0 %v989
    %1059 = vmatpush.bf16.msra.mxu0 %v988
    %1060 = vmatpush.bf16.msra.mxu0 %v987
    %1061 = vmatpush.bf16.msra.mxu0 %v986
    %1062 = vmatpush.bf16.msra.mxu0 %v985
    %1063 = vmatmul.bf16.gmra.mxu0 %v813
    %v1064 = vpop.f32.mrf.mxu0
    %v1065 = vadd.f32 %v1046, %v1064
    %v1066 = vpop.f32.mrf.mxu0
    %v1067 = vadd.f32 %v1048, %v1066
    %1068 = vmatmul.bf16.gmra.mxu0 %v814
    %v1069 = vpop.f32.mrf.mxu0
    %v1070 = vadd.f32 %v1051, %v1069
    %v1071 = vpop.f32.mrf.mxu0
    %v1072 = vadd.f32 %v1053, %v1071
    %1073 = vdwg.mxu0
    %v1074 = vld [vmem:[%s12] sm:$0x1]
    %v1076 = vperm.slane %v1074, 0
    %v1078 = vmul.f32 %v759, %v1076
    %v1079 = vmul.f32 %v763, %v1076
    %v1080 = vmul.f32 %v767, %v1076
    %v1081 = vmul.f32 %v771, %v1076
    %v1082 = vadd.f32 %v1065, %v1078
    %v1083 = vadd.f32 %v1067, %v1079
    %v1084 = vadd.f32 %v1070, %v1080
    %v1085 = vadd.f32 %v1072, %v1081
    %1086 = vst [vmem:[#allocation8] sm:$0xff] %v1082
    %1087 = vst [vmem:[#allocation8 + $0x8] sm:$0xff] %v1083
    %1088 = vst [vmem:[#allocation8 + $0x10] sm:$0xff] %v1084
    %1089 = vst [vmem:[#allocation8 + $0x18] sm:$0xff] %v1085
    // Predicated region
    $region66: #{tpu_custom_call.1} parent=1 // pred_check
      _
    $region67: #{tpu_custom_call.1} parent=1 // pred_check_branch
      %1091 = sbr.rel (0) target = $region69
    $region68: #{tpu_custom_call.1} parent=1 // pred_region
      %1093 = vsyncadd [#allocation4], 0
      %s1094 = sshll.u32 [#allocation8], 4
      %s1095 = int_to_ptr.vmem [resolvable:$true] %s1094
      %s1096 = sshll.u32 %s13, 4
      %s1097 = int_to_ptr.hbm [resolvable:$true] %s1096
      %1102 = dma.vmem_to_hbm [thread:$0]  %s1095, 512, %s1097, [#allocation4], 128, 128, 8
    $region69: #{tpu_custom_call.1} parent=1 // pred_fallthru
      _
    // Predicated region
    $region70: #{tpu_custom_call.1} parent=1 // pred_check
      _
    $region71: #{tpu_custom_call.1} parent=1 // pred_check_branch
      %1104 = sbr.rel (0) target = $region73
    $region72: #{tpu_custom_call.1} parent=1 // pred_region
      %1106 = dma.done [#allocation4], 512
    $region73: #{tpu_custom_call.1} parent=1 // pred_fallthru
      _
    %1107 = vsyncpa [#allocation3], 1
    %1108 = vsyncpa [#allocation6], 1
    %1109 = vsyncpa [#allocation4], 1

// kernel: tpu_custom_call.1
$region0: #{tpu_custom_call.1}
  #allocation0 [shape = 'u32[]', space=smem, size = 0x4, offset = 0x4, fixed_abs, tag = 'smem constant byte address 0x4 - core index']
  #allocation1 [shape = 'u32[72,128]{1,0:T(1,128)}', space=vmem, size = 0x9000, scoped, tag = 'internal scratch']
  %s0 = inlined_call_operand.vmem [shape: f32[32,4], index: 0, kind: input, shape index: {}]
  %s1 = inlined_call_operand.vmem [shape: f32[32,2], index: 1, kind: input, shape index: {}]
  %s2 = inlined_call_operand.vmem [shape: f32[4,128], index: 2, kind: input, shape index: {}]
  %s3 = inlined_call_operand.vmem [shape: f32[1,128], index: 3, kind: input, shape index: {}]
  %s4 = inlined_call_operand.hbm [shape: bf16[2,128,128], index: 4, kind: input, shape index: {}]
  %s5 = inlined_call_operand.vmem [shape: f32[2,1,128], index: 5, kind: input, shape index: {}]
  %s6 = inlined_call_operand.vmem [shape: f32[1,128], index: 6, kind: input, shape index: {}]
  %s7 = inlined_call_operand.vmem [shape: f32[1,128], index: 7, kind: input, shape index: {}]
  %s8 = inlined_call_operand.hbm [shape: bf16[2,128,128], index: 8, kind: input, shape index: {}]
  %s9 = inlined_call_operand.vmem [shape: f32[2,1,128], index: 9, kind: input, shape index: {}]
  %s10 = inlined_call_operand.hbm [shape: bf16[384,128], index: 10, kind: input, shape index: {}]
  %s11 = inlined_call_operand.vmem [shape: f32[1,128], index: 11, kind: input, shape index: {}]
  %s12 = inlined_call_operand.vmem [shape: f32[1,128], index: 12, kind: input, shape index: {}]
  %s13 = inlined_call_operand.hbm [shape: f32[32,128], index: 13, kind: output, shape index: {}]
  %s14 = sld [smem:[#allocation0]]
  $region74: #{tpu_custom_call.1} parent=0
    _
  %s16 = ssub.s32 1, %s14
  %s17 = scalar_select 0, %s16, %s14
  $region1: #{tpu_custom_call.1} parent=0
    #allocation2 [shape = 'u8[65536]{0}', space=vmem, size = 0x10000, scoped, tag = 'input window, operand 4, single buffered']
    #allocation3 [shape = 's32[1]{0}', space=sflag, size = 0x4, scoped, tag = 'scoped memory for tpu_custom_call.1']
    #allocation4 [shape = 's32[1]{0}', space=sflag, size = 0x4, scoped, tag = 'scoped memory for tpu_custom_call.1']
    #allocation5 [shape = 'u8[65536]{0}', space=vmem, size = 0x10000, scoped, tag = 'input window, operand 8, single buffered']
    #allocation6 [shape = 's32[1]{0}', space=sflag, size = 0x4, scoped, tag = 'scoped memory for tpu_custom_call.1']
    #allocation7 [shape = 'u8[98304]{0}', space=vmem, size = 0x18000, scoped, tag = 'input window, operand 10, single buffered']
    #allocation8 [shape = 'u8[16384]{0}', space=vmem, size = 0x4000, scoped, tag = 'output window, operand 0, single buffered']
    %18 = vsyncpa [#allocation3], 0
    %19 = vsyncpa [#allocation6], 0
    %20 = vsyncpa [#allocation4], 0
    // Predicated region
    $region2: #{tpu_custom_call.1} parent=1 // pred_check
      _
    $region3: #{tpu_custom_call.1} parent=1 // pred_check_branch
      %22 = sbr.rel (0) target = $region5
    $region4: #{tpu_custom_call.1} parent=1 // pred_region
      _
    $region5: #{tpu_custom_call.1} parent=1 // pred_fallthru
      _
    // Predicated region
    $region6: #{tpu_custom_call.1} parent=1 // pred_check
      _
    $region7: #{tpu_custom_call.1} parent=1 // pred_check_branch
      %24 = sbr.rel (0) target = $region9
    $region8: #{tpu_custom_call.1} parent=1 // pred_region
      _
    $region9: #{tpu_custom_call.1} parent=1 // pred_fallthru
      _
    // Predicated region
    $region10: #{tpu_custom_call.1} parent=1 // pred_check
      _
    $region11: #{tpu_custom_call.1} parent=1 // pred_check_branch
      %26 = sbr.rel (0) target = $region13
    $region12: #{tpu_custom_call.1} parent=1 // pred_region
      _
    $region13: #{tpu_custom_call.1} parent=1 // pred_fallthru
      _
    // Predicated region
    $region14: #{tpu_custom_call.1} parent=1 // pred_check
      _
    $region15: #{tpu_custom_call.1} parent=1 // pred_check_branch
      %28 = sbr.rel (0) target = $region17
    $region16: #{tpu_custom_call.1} parent=1 // pred_region
      _
    $region17: #{tpu_custom_call.1} parent=1 // pred_fallthru
      _
    // Predicated region
    $region18: #{tpu_custom_call.1} parent=1 // pred_check
      _
    $region19: #{tpu_custom_call.1} parent=1 // pred_check_branch
      %30 = sbr.rel (0) target = $region21
    $region20: #{tpu_custom_call.1} parent=1 // pred_region
      %32 = vsyncadd [#allocation3], 0
      %s33 = sshll.u32 %s4, 4
      %s34 = int_to_ptr.hbm [resolvable:$true] %s33
      %s35 = sshll.u32 [#allocation2], 4
      %s36 = int_to_ptr.vmem [resolvable:$true] %s35
      %41 = dma.hbm_to_vmem [thread:$0]  %s34, 2048, %s36, [#allocation3], 64, 64, 4
    $region21: #{tpu_custom_call.1} parent=1 // pred_fallthru
      _
    // Predicated region
    $region22: #{tpu_custom_call.1} parent=1 // pred_check
      _
    $region23: #{tpu_custom_call.1} parent=1 // pred_check_branch
      %43 = sbr.rel (0) target = $region25
    $region24: #{tpu_custom_call.1} parent=1 // pred_region
      _
    $region25: #{tpu_custom_call.1} parent=1 // pred_fallthru
      _
    // Predicated region
    $region26: #{tpu_custom_call.1} parent=1 // pred_check
      _
    $region27: #{tpu_custom_call.1} parent=1 // pred_check_branch
      %45 = sbr.rel (0) target = $region29
    $region28: #{tpu_custom_call.1} parent=1 // pred_region
      _
    $region29: #{tpu_custom_call.1} parent=1 // pred_fallthru
      _
    // Predicated region
    $region30: #{tpu_custom_call.1} parent=1 // pred_check
      _
    $region31: #{tpu_custom_call.1} parent=1 // pred_check_branch
      %47 = sbr.rel (0) target = $region33
    $region32: #{tpu_custom_call.1} parent=1 // pred_region
      _
    $region33: #{tpu_custom_call.1} parent=1 // pred_fallthru
      _
    // Predicated region
    $region34: #{tpu_custom_call.1} parent=1 // pred_check
      _
    $region35: #{tpu_custom_call.1} parent=1 // pred_check_branch
      %49 = sbr.rel (0) target = $region37
    $region36: #{tpu_custom_call.1} parent=1 // pred_region
      %51 = vsyncadd [#allocation6], 0
      %s52 = sshll.u32 %s8, 4
      %s53 = int_to_ptr.hbm [resolvable:$true] %s52
      %s54 = sshll.u32 [#allocation5], 4
      %s55 = int_to_ptr.vmem [resolvable:$true] %s54
      %60 = dma.hbm_to_vmem [thread:$0]  %s53, 2048, %s55, [#allocation6], 64, 64, 4
    $region37: #{tpu_custom_call.1} parent=1 // pred_fallthru
      _
    // Predicated region
    $region38: #{tpu_custom_call.1} parent=1 // pred_check
      _
    $region39: #{tpu_custom_call.1} parent=1 // pred_check_branch
      %62 = sbr.rel (0) target = $region41
    $region40: #{tpu_custom_call.1} parent=1 // pred_region
      _
    $region41: #{tpu_custom_call.1} parent=1 // pred_fallthru
      _
    // Predicated region
    $region42: #{tpu_custom_call.1} parent=1 // pred_check
      _
    $region43: #{tpu_custom_call.1} parent=1 // pred_check_branch
      %64 = sbr.rel (0) target = $region45
    $region44: #{tpu_custom_call.1} parent=1 // pred_region
      %66 = vsyncadd [#allocation6], 0
      %s67 = sshll.u32 %s10, 4
      %s68 = int_to_ptr.hbm [resolvable:$true] %s67
      %s69 = sshll.u32 [#allocation7], 4
      %s70 = int_to_ptr.vmem [resolvable:$true] %s69
      %75 = dma.hbm_to_vmem [thread:$0]  %s68, 3072, %s70, [#allocation6], 64, 64, 4
    $region45: #{tpu_custom_call.1} parent=1 // pred_fallthru
      _
    // Predicated region
    $region46: #{tpu_custom_call.1} parent=1 // pred_check
      _
    $region47: #{tpu_custom_call.1} parent=1 // pred_check_branch
      %77 = sbr.rel (0) target = $region49
    $region48: #{tpu_custom_call.1} parent=1 // pred_region
      _
    $region49: #{tpu_custom_call.1} parent=1 // pred_fallthru
      _
    // Predicated region
    $region50: #{tpu_custom_call.1} parent=1 // pred_check
      _
    $region51: #{tpu_custom_call.1} parent=1 // pred_check_branch
      %79 = sbr.rel (0) target = $region53
    $region52: #{tpu_custom_call.1} parent=1 // pred_region
      _
    $region53: #{tpu_custom_call.1} parent=1 // pred_fallthru
      _
    // Predicated region
    $region54: #{tpu_custom_call.1} parent=1 // pred_check
      _
    $region55: #{tpu_custom_call.1} parent=1 // pred_check_branch
      %81 = sbr.rel (0) target = $region57
    $region56: #{tpu_custom_call.1} parent=1 // pred_region
      %83 = dma.done [#allocation3], 2048
    $region57: #{tpu_custom_call.1} parent=1 // pred_fallthru
      _
    // Predicated region
    $region58: #{tpu_custom_call.1} parent=1 // pred_check
      _
    $region59: #{tpu_custom_call.1} parent=1 // pred_check_branch
      %85 = sbr.rel (0) target = $region61
    $region60: #{tpu_custom_call.1} parent=1 // pred_region
      %87 = dma.done [#allocation6], 2048
    $region61: #{tpu_custom_call.1} parent=1 // pred_fallthru
      _
    // Predicated region
    $region62: #{tpu_custom_call.1} parent=1 // pred_check
      _
    $region63: #{tpu_custom_call.1} parent=1 // pred_check_branch
      %89 = sbr.rel (0) target = $region65
    $region64: #{tpu_custom_call.1} parent=1 // pred_region
      %91 = dma.done [#allocation6], 3072
    $region65: #{tpu_custom_call.1} parent=1 // pred_fallthru
      _
    %v92 = vld [vmem:[%s0] sm:$0xff]
    %v93 = vld [vmem:[%s0 + $0x8] sm:$0xff]
    %v94 = vld [vmem:[%s0 + $0x10] sm:$0xff]
    %v95 = vld [vmem:[%s0 + $0x18] sm:$0xff]
    %v96 = vld [vmem:[%s1] sm:$0xff]
    %v97 = vld [vmem:[%s1 + $0x8] sm:$0xff]
    %v98 = vld [vmem:[%s1 + $0x10] sm:$0xff]
    %v99 = vld [vmem:[%s1 + $0x18] sm:$0xff]
    %v100 = vcvt.f32.s32.to.zero.pseudo %v92
    %v101 = vcvt.f32.s32.to.zero.pseudo %v93
    %v102 = vcvt.f32.s32.to.zero.pseudo %v94
    %v103 = vcvt.f32.s32.to.zero.pseudo %v95
    %vm104 = vcmp.eq.s32.totalorder %v100, 1
    %vm105 = vcmp.eq.s32.totalorder %v101, 1
    %vm106 = vcmp.eq.s32.totalorder %v102, 1
    %vm107 = vcmp.eq.s32.totalorder %v103, 1
    %v108 = vsel %vm104, 1, 0
    %v109 = vsel %vm105, 1, 0
    %v110 = vsel %vm106, 1, 0
    %v111 = vsel %vm107, 1, 0
    %v112 = vcvt.s32.f32 %v108
    %v113 = vcvt.s32.f32 %v109
    %v114 = vcvt.s32.f32 %v110
    %v115 = vcvt.s32.f32 %v111
    %v116 = vld [vmem:[%s2 + $0x1] sm:$0x1]
    %118 = vset.pattern.permute.xlu0 1
    %119 = vperm.xlu0 %118, %v92
    %v120 = vpop.permute.xlu0 %119
    %123 = vset.pattern.permute.xlu0 1
    %124 = vperm.xlu0 %123, %v93
    %v125 = vpop.permute.xlu0 %124
    %128 = vset.pattern.permute.xlu0 1
    %129 = vperm.xlu0 %128, %v94
    %v130 = vpop.permute.xlu0 %129
    %133 = vset.pattern.permute.xlu0 1
    %134 = vperm.xlu0 %133, %v95
    %v135 = vpop.permute.xlu0 %134
    %v137 = vperm.slane %v116, 0
    %v138 = vmul.f32 %v120, %v137
    %v139 = vmul.f32 %v125, %v137
    %v140 = vmul.f32 %v130, %v137
    %v141 = vmul.f32 %v135, %v137
    %v142 = vld [vmem:[%s2 + $0x2] sm:$0x1]
    %143 = vset.pattern.permute.xlu0 2
    %144 = vperm.xlu0 %143, %v92
    %v145 = vpop.permute.xlu0 %144
    %147 = vset.pattern.permute.xlu0 2
    %148 = vperm.xlu0 %147, %v93
    %v149 = vpop.permute.xlu0 %148
    %151 = vset.pattern.permute.xlu0 2
    %152 = vperm.xlu0 %151, %v94
    %v153 = vpop.permute.xlu0 %152
    %155 = vset.pattern.permute.xlu0 2
    %156 = vperm.xlu0 %155, %v95
    %v157 = vpop.permute.xlu0 %156
    %v159 = vperm.slane %v142, 0
    %v160 = vmul.f32 %v145, %v159
    %v161 = vmul.f32 %v149, %v159
    %v162 = vmul.f32 %v153, %v159
    %v163 = vmul.f32 %v157, %v159
    %v164 = vadd.f32 %v138, %v160
    %v165 = vadd.f32 %v139, %v161
    %v166 = vadd.f32 %v140, %v162
    %v167 = vadd.f32 %v141, %v163
    %v168 = vld [vmem:[%s2 + $0x3] sm:$0x1]
    %169 = vset.pattern.permute.xlu0 3
    %170 = vperm.xlu0 %169, %v92
    %v171 = vpop.permute.xlu0 %170
    %173 = vset.pattern.permute.xlu0 3
    %174 = vperm.xlu0 %173, %v93
    %v175 = vpop.permute.xlu0 %174
    %177 = vset.pattern.permute.xlu0 3
    %178 = vperm.xlu0 %177, %v94
    %v179 = vpop.permute.xlu0 %178
    %181 = vset.pattern.permute.xlu0 3
    %182 = vperm.xlu0 %181, %v95
    %v183 = vpop.permute.xlu0 %182
    %v185 = vperm.slane %v168, 0
    %v186 = vmul.f32 %v171, %v185
    %v187 = vmul.f32 %v175, %v185
    %v188 = vmul.f32 %v179, %v185
    %v189 = vmul.f32 %v183, %v185
    %v190 = vadd.f32 %v164, %v186
    %v191 = vadd.f32 %v165, %v187
    %v192 = vadd.f32 %v166, %v188
    %v193 = vadd.f32 %v167, %v189
    %v194 = vld [vmem:[%s3] sm:$0x1]
    %v196 = vperm.slane %v194, 0
    %v198 = vadd.f32 %v190, %v196
    %v199 = vadd.f32 %v191, %v196
    %v200 = vadd.f32 %v192, %v196
    %v201 = vadd.f32 %v193, %v196
    %v202 = vmax.f32 %v198, 0.0
    %v203 = vmax.f32 %v199, 0.0
    %v204 = vmax.f32 %v200, 0.0
    %v205 = vmax.f32 %v201, 0.0
    %v206 = vpack.c.bf16 %v203, %v202
    %v207 = vpack.c.bf16 %v205, %v204
    %v208 = vld [vmem:[#allocation2] sm:$0xf]
    %v209 = vld [vmem:[#allocation2 + $0x4] sm:$0xf]
    %v210 = vld [vmem:[#allocation2 + $0x8] sm:$0xf]
    %v211 = vld [vmem:[#allocation2 + $0xc] sm:$0xf]
    %v212 = vld [vmem:[#allocation2 + $0x10] sm:$0xf]
    %v213 = vld [vmem:[#allocation2 + $0x14] sm:$0xf]
    %v214 = vld [vmem:[#allocation2 + $0x18] sm:$0xf]
    %v215 = vld [vmem:[#allocation2 + $0x1c] sm:$0xf]
    %v216 = vld [vmem:[#allocation2 + $0x20] sm:$0xf]
    %v217 = vld [vmem:[#allocation2 + $0x24] sm:$0xf]
    %v218 = vld [vmem:[#allocation2 + $0x28] sm:$0xf]
    %v219 = vld [vmem:[#allocation2 + $0x2c] sm:$0xf]
    %v220 = vld [vmem:[#allocation2 + $0x30] sm:$0xf]
    %v221 = vld [vmem:[#allocation2 + $0x34] sm:$0xf]
    %v222 = vld [vmem:[#allocation2 + $0x38] sm:$0xf]
    %v223 = vld [vmem:[#allocation2 + $0x3c] sm:$0xf]
    %v224 = vld [vmem:[%s5] sm:$0x1]
    %v226 = vperm.slane %v224, 0
    %v244 = vunpack.c.l.b16 %v208
    %v245 = vunpack.c.l.b16 %v209
    %v246 = vunpack.c.l.b16 %v210
    %v247 = vunpack.c.l.b16 %v211
    %v248 = vunpack.c.l.b16 %v212
    %v249 = vunpack.c.l.b16 %v213
    %v250 = vunpack.c.l.b16 %v214
    %v251 = vunpack.c.l.b16 %v215
    %v252 = vunpack.c.l.b16 %v216
    %v253 = vunpack.c.l.b16 %v217
    %v254 = vunpack.c.l.b16 %v218
    %v255 = vunpack.c.l.b16 %v219
    %v256 = vunpack.c.l.b16 %v220
    %v257 = vunpack.c.l.b16 %v221
    %v258 = vunpack.c.l.b16 %v222
    %v259 = vunpack.c.l.b16 %v223
    %v260 = vpack.c.b16 %v245, %v244
    %v261 = vpack.c.b16 %v247, %v246
    %v262 = vpack.c.b16 %v249, %v248
    %v263 = vpack.c.b16 %v251, %v250
    %v264 = vpack.c.b16 %v253, %v252
    %v265 = vpack.c.b16 %v255, %v254
    %v266 = vpack.c.b16 %v257, %v256
    %v267 = vpack.c.b16 %v259, %v258
    %276 = vmatpush.bf16.msra.mxu0 %v267
    %277 = vmatpush.bf16.msra.mxu0 %v266
    %278 = vmatpush.bf16.msra.mxu0 %v265
    %279 = vmatpush.bf16.msra.mxu0 %v264
    %280 = vmatpush.bf16.msra.mxu0 %v263
    %281 = vmatpush.bf16.msra.mxu0 %v262
    %282 = vmatpush.bf16.msra.mxu0 %v261
    %283 = vmatpush.bf16.msra.mxu0 %v260
    %284 = vmatmul.bf16.gmra.mxu0 %v206
    %v285 = vpop.f32.mrf.mxu0
    %v286 = vadd.f32 %v226, %v285
    %v287 = vpop.f32.mrf.mxu0
    %v288 = vadd.f32 %v226, %v287
    %289 = vmatmul.bf16.gmra.mxu0 %v207
    %v290 = vpop.f32.mrf.mxu0
    %v291 = vadd.f32 %v226, %v290
    %v292 = vpop.f32.mrf.mxu0
    %v293 = vadd.f32 %v226, %v292
    %294 = vdwg.mxu0
    %v295 = vmax.f32 %v286, 0.0
    %v296 = vmax.f32 %v288, 0.0
    %v297 = vmax.f32 %v291, 0.0
    %v298 = vmax.f32 %v293, 0.0
    %v299 = vpack.c.bf16 %v296, %v295
    %v300 = vpack.c.bf16 %v298, %v297
    %s301 = scalar_lea.vmem [#allocation2], 64
    %v302 = vld [vmem:[%s301] sm:$0xf]
    %v303 = vld [vmem:[%s301 + $0x4] sm:$0xf]
    %v304 = vld [vmem:[%s301 + $0x8] sm:$0xf]
    %v305 = vld [vmem:[%s301 + $0xc] sm:$0xf]
    %v306 = vld [vmem:[%s301 + $0x10] sm:$0xf]
    %v307 = vld [vmem:[%s301 + $0x14] sm:$0xf]
    %v308 = vld [vmem:[%s301 + $0x18] sm:$0xf]
    %v309 = vld [vmem:[%s301 + $0x1c] sm:$0xf]
    %v310 = vld [vmem:[%s301 + $0x20] sm:$0xf]
    %v311 = vld [vmem:[%s301 + $0x24] sm:$0xf]
    %v312 = vld [vmem:[%s301 + $0x28] sm:$0xf]
    %v313 = vld [vmem:[%s301 + $0x2c] sm:$0xf]
    %v314 = vld [vmem:[%s301 + $0x30] sm:$0xf]
    %v315 = vld [vmem:[%s301 + $0x34] sm:$0xf]
    %v316 = vld [vmem:[%s301 + $0x38] sm:$0xf]
    %v317 = vld [vmem:[%s301 + $0x3c] sm:$0xf]
    %s318 = scalar_lea.vmem %s5, 1
    %v319 = vld [vmem:[%s318] sm:$0x1]
    %v321 = vperm.slane %v319, 0
    %v339 = vunpack.c.l.b16 %v302
    %v340 = vunpack.c.l.b16 %v303
    %v341 = vunpack.c.l.b16 %v304
    %v342 = vunpack.c.l.b16 %v305
    %v343 = vunpack.c.l.b16 %v306
    %v344 = vunpack.c.l.b16 %v307
    %v345 = vunpack.c.l.b16 %v308
    %v346 = vunpack.c.l.b16 %v309
    %v347 = vunpack.c.l.b16 %v310
    %v348 = vunpack.c.l.b16 %v311
    %v349 = vunpack.c.l.b16 %v312
    %v350 = vunpack.c.l.b16 %v313
    %v351 = vunpack.c.l.b16 %v314
    %v352 = vunpack.c.l.b16 %v315
    %v353 = vunpack.c.l.b16 %v316
    %v354 = vunpack.c.l.b16 %v317
    %v355 = vpack.c.b16 %v340, %v339
    %v356 = vpack.c.b16 %v342, %v341
    %v357 = vpack.c.b16 %v344, %v343
    %v358 = vpack.c.b16 %v346, %v345
    %v359 = vpack.c.b16 %v348, %v347
    %v360 = vpack.c.b16 %v350, %v349
    %v361 = vpack.c.b16 %v352, %v351
    %v362 = vpack.c.b16 %v354, %v353
    %371 = vmatpush.bf16.msra.mxu0 %v362
    %372 = vmatpush.bf16.msra.mxu0 %v361
    %373 = vmatpush.bf16.msra.mxu0 %v360
    %374 = vmatpush.bf16.msra.mxu0 %v359
    %375 = vmatpush.bf16.msra.mxu0 %v358
    %376 = vmatpush.bf16.msra.mxu0 %v357
    %377 = vmatpush.bf16.msra.mxu0 %v356
    %378 = vmatpush.bf16.msra.mxu0 %v355
    %379 = vmatmul.bf16.gmra.mxu0 %v299
    %v380 = vpop.f32.mrf.mxu0
    %v381 = vadd.f32 %v321, %v380
    %v382 = vpop.f32.mrf.mxu0
    %v383 = vadd.f32 %v321, %v382
    %384 = vmatmul.bf16.gmra.mxu0 %v300
    %v385 = vpop.f32.mrf.mxu0
    %v386 = vadd.f32 %v321, %v385
    %v387 = vpop.f32.mrf.mxu0
    %v388 = vadd.f32 %v321, %v387
    %389 = vdwg.mxu0
    %v390 = vmax.f32 %v381, 0.0
    %v391 = vmax.f32 %v383, 0.0
    %v392 = vmax.f32 %v386, 0.0
    %v393 = vmax.f32 %v388, 0.0
    %v394 = vld [vmem:[%s6] sm:$0x1]
    %396 = vset.pattern.permute.xlu0 0
    %397 = vperm.xlu0 %396, %v96
    %v398 = vpop.permute.xlu0 %397
    %401 = vset.pattern.permute.xlu0 0
    %402 = vperm.xlu0 %401, %v97
    %v403 = vpop.permute.xlu0 %402
    %406 = vset.pattern.permute.xlu0 0
    %407 = vperm.xlu0 %406, %v98
    %v408 = vpop.permute.xlu0 %407
    %411 = vset.pattern.permute.xlu0 0
    %412 = vperm.xlu0 %411, %v99
    %v413 = vpop.permute.xlu0 %412
    %v416 = vperm.slane %v394, 0
    %v418 = vmul.f32 %v398, %v416
    %v419 = vmul.f32 %v403, %v416
    %v420 = vmul.f32 %v408, %v416
    %v421 = vmul.f32 %v413, %v416
    %v422 = vld [vmem:[%s7] sm:$0x1]
    %v424 = vperm.slane %v422, 0
    %v426 = vadd.f32 %v418, %v424
    %v427 = vadd.f32 %v419, %v424
    %v428 = vadd.f32 %v420, %v424
    %v429 = vadd.f32 %v421, %v424
    %v430 = vmax.f32 %v426, 0.0
    %v431 = vmax.f32 %v427, 0.0
    %v432 = vmax.f32 %v428, 0.0
    %v433 = vmax.f32 %v429, 0.0
    %v434 = vpack.c.bf16 %v431, %v430
    %v435 = vpack.c.bf16 %v433, %v432
    %v436 = vld [vmem:[#allocation5] sm:$0xf]
    %v437 = vld [vmem:[#allocation5 + $0x4] sm:$0xf]
    %v438 = vld [vmem:[#allocation5 + $0x8] sm:$0xf]
    %v439 = vld [vmem:[#allocation5 + $0xc] sm:$0xf]
    %v440 = vld [vmem:[#allocation5 + $0x10] sm:$0xf]
    %v441 = vld [vmem:[#allocation5 + $0x14] sm:$0xf]
    %v442 = vld [vmem:[#allocation5 + $0x18] sm:$0xf]
    %v443 = vld [vmem:[#allocation5 + $0x1c] sm:$0xf]
    %v444 = vld [vmem:[#allocation5 + $0x20] sm:$0xf]
    %v445 = vld [vmem:[#allocation5 + $0x24] sm:$0xf]
    %v446 = vld [vmem:[#allocation5 + $0x28] sm:$0xf]
    %v447 = vld [vmem:[#allocation5 + $0x2c] sm:$0xf]
    %v448 = vld [vmem:[#allocation5 + $0x30] sm:$0xf]
    %v449 = vld [vmem:[#allocation5 + $0x34] sm:$0xf]
    %v450 = vld [vmem:[#allocation5 + $0x38] sm:$0xf]
    %v451 = vld [vmem:[#allocation5 + $0x3c] sm:$0xf]
    %v452 = vld [vmem:[%s9] sm:$0x1]
    %v454 = vperm.slane %v452, 0
    %v472 = vunpack.c.l.b16 %v436
    %v473 = vunpack.c.l.b16 %v437
    %v474 = vunpack.c.l.b16 %v438
    %v475 = vunpack.c.l.b16 %v439
    %v476 = vunpack.c.l.b16 %v440
    %v477 = vunpack.c.l.b16 %v441
    %v478 = vunpack.c.l.b16 %v442
    %v479 = vunpack.c.l.b16 %v443
    %v480 = vunpack.c.l.b16 %v444
    %v481 = vunpack.c.l.b16 %v445
    %v482 = vunpack.c.l.b16 %v446
    %v483 = vunpack.c.l.b16 %v447
    %v484 = vunpack.c.l.b16 %v448
    %v485 = vunpack.c.l.b16 %v449
    %v486 = vunpack.c.l.b16 %v450
    %v487 = vunpack.c.l.b16 %v451
    %v488 = vpack.c.b16 %v473, %v472
    %v489 = vpack.c.b16 %v475, %v474
    %v490 = vpack.c.b16 %v477, %v476
    %v491 = vpack.c.b16 %v479, %v478
    %v492 = vpack.c.b16 %v481, %v480
    %v493 = vpack.c.b16 %v483, %v482
    %v494 = vpack.c.b16 %v485, %v484
    %v495 = vpack.c.b16 %v487, %v486
    %504 = vmatpush.bf16.msra.mxu0 %v495
    %505 = vmatpush.bf16.msra.mxu0 %v494
    %506 = vmatpush.bf16.msra.mxu0 %v493
    %507 = vmatpush.bf16.msra.mxu0 %v492
    %508 = vmatpush.bf16.msra.mxu0 %v491
    %509 = vmatpush.bf16.msra.mxu0 %v490
    %510 = vmatpush.bf16.msra.mxu0 %v489
    %511 = vmatpush.bf16.msra.mxu0 %v488
    %512 = vmatmul.bf16.gmra.mxu0 %v434
    %v513 = vpop.f32.mrf.mxu0
    %v514 = vadd.f32 %v454, %v513
    %v515 = vpop.f32.mrf.mxu0
    %v516 = vadd.f32 %v454, %v515
    %517 = vmatmul.bf16.gmra.mxu0 %v435
    %v518 = vpop.f32.mrf.mxu0
    %v519 = vadd.f32 %v454, %v518
    %v520 = vpop.f32.mrf.mxu0
    %v521 = vadd.f32 %v454, %v520
    %522 = vdwg.mxu0
    %v523 = vmax.f32 %v514, 0.0
    %v524 = vmax.f32 %v516, 0.0
    %v525 = vmax.f32 %v519, 0.0
    %v526 = vmax.f32 %v521, 0.0
    %v527 = vpack.c.bf16 %v524, %v523
    %v528 = vpack.c.bf16 %v526, %v525
    %s529 = scalar_lea.vmem [#allocation5], 64
    %v530 = vld [vmem:[%s529] sm:$0xf]
    %v531 = vld [vmem:[%s529 + $0x4] sm:$0xf]
    %v532 = vld [vmem:[%s529 + $0x8] sm:$0xf]
    %v533 = vld [vmem:[%s529 + $0xc] sm:$0xf]
    %v534 = vld [vmem:[%s529 + $0x10] sm:$0xf]
    %v535 = vld [vmem:[%s529 + $0x14] sm:$0xf]
    %v536 = vld [vmem:[%s529 + $0x18] sm:$0xf]
    %v537 = vld [vmem:[%s529 + $0x1c] sm:$0xf]
    %v538 = vld [vmem:[%s529 + $0x20] sm:$0xf]
    %v539 = vld [vmem:[%s529 + $0x24] sm:$0xf]
    %v540 = vld [vmem:[%s529 + $0x28] sm:$0xf]
    %v541 = vld [vmem:[%s529 + $0x2c] sm:$0xf]
    %v542 = vld [vmem:[%s529 + $0x30] sm:$0xf]
    %v543 = vld [vmem:[%s529 + $0x34] sm:$0xf]
    %v544 = vld [vmem:[%s529 + $0x38] sm:$0xf]
    %v545 = vld [vmem:[%s529 + $0x3c] sm:$0xf]
    %s546 = scalar_lea.vmem %s9, 1
    %v547 = vld [vmem:[%s546] sm:$0x1]
    %v549 = vperm.slane %v547, 0
    %v567 = vunpack.c.l.b16 %v530
    %v568 = vunpack.c.l.b16 %v531
    %v569 = vunpack.c.l.b16 %v532
    %v570 = vunpack.c.l.b16 %v533
    %v571 = vunpack.c.l.b16 %v534
    %v572 = vunpack.c.l.b16 %v535
    %v573 = vunpack.c.l.b16 %v536
    %v574 = vunpack.c.l.b16 %v537
    %v575 = vunpack.c.l.b16 %v538
    %v576 = vunpack.c.l.b16 %v539
    %v577 = vunpack.c.l.b16 %v540
    %v578 = vunpack.c.l.b16 %v541
    %v579 = vunpack.c.l.b16 %v542
    %v580 = vunpack.c.l.b16 %v543
    %v581 = vunpack.c.l.b16 %v544
    %v582 = vunpack.c.l.b16 %v545
    %v583 = vpack.c.b16 %v568, %v567
    %v584 = vpack.c.b16 %v570, %v569
    %v585 = vpack.c.b16 %v572, %v571
    %v586 = vpack.c.b16 %v574, %v573
    %v587 = vpack.c.b16 %v576, %v575
    %v588 = vpack.c.b16 %v578, %v577
    %v589 = vpack.c.b16 %v580, %v579
    %v590 = vpack.c.b16 %v582, %v581
    %599 = vmatpush.bf16.msra.mxu0 %v590
    %600 = vmatpush.bf16.msra.mxu0 %v589
    %601 = vmatpush.bf16.msra.mxu0 %v588
    %602 = vmatpush.bf16.msra.mxu0 %v587
    %603 = vmatpush.bf16.msra.mxu0 %v586
    %604 = vmatpush.bf16.msra.mxu0 %v585
    %605 = vmatpush.bf16.msra.mxu0 %v584
    %606 = vmatpush.bf16.msra.mxu0 %v583
    %607 = vmatmul.bf16.gmra.mxu0 %v527
    %v608 = vpop.f32.mrf.mxu0
    %v609 = vadd.f32 %v549, %v608
    %v610 = vpop.f32.mrf.mxu0
    %v611 = vadd.f32 %v549, %v610
    %612 = vmatmul.bf16.gmra.mxu0 %v528
    %v613 = vpop.f32.mrf.mxu0
    %v614 = vadd.f32 %v549, %v613
    %v615 = vpop.f32.mrf.mxu0
    %v616 = vadd.f32 %v549, %v615
    %617 = vdwg.mxu0
    %v618 = vmax.f32 %v609, 0.0
    %v619 = vmax.f32 %v611, 0.0
    %v620 = vmax.f32 %v614, 0.0
    %v621 = vmax.f32 %v616, 0.0
    %v622 = vlaneseq
    %v623 = vand.u32 %v622, 127
    %v624 = vsub.f32 1.0, %v96
    %v625 = vsub.f32 1.0, %v97
    %v626 = vsub.f32 1.0, %v98
    %v627 = vsub.f32 1.0, %v99
    %v628 = vpack.c.bf16 %v624, %v624
    %v629 = vpack.c.bf16 %v625, %v625
    %v630 = vpack.c.bf16 %v626, %v626
    %v631 = vpack.c.bf16 %v627, %v627
    %632 = vset.pattern.permute.xlu0 0
    %633 = vperm.xlu0 %632, %v100
    %v634 = vpop.permute.xlu0 %633
    %635 = vset.pattern.permute.xlu0 0
    %636 = vperm.xlu0 %635, %v101
    %v637 = vpop.permute.xlu0 %636
    %638 = vset.pattern.permute.xlu0 0
    %639 = vperm.xlu0 %638, %v102
    %v640 = vpop.permute.xlu0 %639
    %641 = vset.pattern.permute.xlu0 0
    %642 = vperm.xlu0 %641, %v103
    %v643 = vpop.permute.xlu0 %642
    %vm644 = vcmp.eq.s32.totalorder %v623, %v634
    %vm645 = vcmp.eq.s32.totalorder %v623, %v637
    %vm646 = vcmp.eq.s32.totalorder %v623, %v640
    %vm647 = vcmp.eq.s32.totalorder %v623, %v643
    %v648 = vsel %vm644, 1, 0
    %v649 = vsel %vm645, 1, 0
    %v650 = vsel %vm646, 1, 0
    %v651 = vsel %vm647, 1, 0
    %v652 = vcvt.s32.f32 %v648
    %v653 = vcvt.s32.f32 %v649
    %v654 = vcvt.s32.f32 %v650
    %v655 = vcvt.s32.f32 %v651
    %v656 = vpack.c.bf16 %v652, %v652
    %v657 = vpack.c.bf16 %v653, %v653
    %v658 = vpack.c.bf16 %v654, %v654
    %v659 = vpack.c.bf16 %v655, %v655
    %vm660 = vcmp.eq.s32.totalorder %v623, 0
    %v661 = vsel %vm660, 1, 0
    %v662 = vcvt.s32.f32 %v661
    %v663 = vpack.c.bf16 %v662, %v662
    %665 = vset.pattern.permute.xlu0 1
    %666 = vperm.xlu0 %665, %v628
    %v667 = vpop.permute.xlu0 %666
    %v670 = vunpack.c.l.s4 839922192
    %v671 = vunpack.c.0.s8 %v670
    %v672 = vperm.slane %v667, %v671
    %674 = vset.pattern.permute.xlu0 1
    %675 = vperm.xlu0 %674, %v629
    %v676 = vpop.permute.xlu0 %675
    %v679 = vunpack.c.l.s4 839922192
    %v680 = vunpack.c.0.s8 %v679
    %v681 = vperm.slane %v676, %v680
    %683 = vset.pattern.permute.xlu0 1
    %684 = vperm.xlu0 %683, %v630
    %v685 = vpop.permute.xlu0 %684
    %v688 = vunpack.c.l.s4 839922192
    %v689 = vunpack.c.0.s8 %v688
    %v690 = vperm.slane %v685, %v689
    %692 = vset.pattern.permute.xlu0 1
    %693 = vperm.xlu0 %692, %v631
    %v694 = vpop.permute.xlu0 %693
    %v697 = vunpack.c.l.s4 839922192
    %v698 = vunpack.c.0.s8 %v697
    %v699 = vperm.slane %v694, %v698
    %v700 = vunpack.c.l.bf16 %v672
    %v701 = vunpack.c.l.bf16 %v681
    %v702 = vunpack.c.l.bf16 %v690
    %v703 = vunpack.c.l.bf16 %v699
    %v704 = vunpack.c.l.bf16 %v663
    %v705 = vmul.f32 %v700, %v704
    %v706 = vmul.f32 %v701, %v704
    %v707 = vmul.f32 %v702, %v704
    %v708 = vmul.f32 %v703, %v704
    %v709 = vpack.c.bf16 %v705, %v705
    %v710 = vpack.c.bf16 %v706, %v706
    %v711 = vpack.c.bf16 %v707, %v707
    %v712 = vpack.c.bf16 %v708, %v708
    %v713 = vunpack.c.l.bf16 %v656
    %v714 = vunpack.c.l.bf16 %v657
    %v715 = vunpack.c.l.bf16 %v658
    %v716 = vunpack.c.l.bf16 %v659
    %v717 = vunpack.c.l.bf16 %v709
    %v718 = vunpack.c.l.bf16 %v710
    %v719 = vunpack.c.l.bf16 %v711
    %v720 = vunpack.c.l.bf16 %v712
    %v721 = vadd.f32 %v713, %v717
    %v722 = vadd.f32 %v714, %v718
    %v723 = vadd.f32 %v715, %v719
    %v724 = vadd.f32 %v716, %v720
    %v725 = vpack.c.bf16 %v721, %v721
    %v726 = vpack.c.bf16 %v722, %v722
    %v727 = vpack.c.bf16 %v723, %v723
    %v728 = vpack.c.bf16 %v724, %v724
    %730 = vset.pattern.permute.xlu0 0
    %731 = vperm.xlu0 %730, %v112
    %v732 = vpop.permute.xlu0 %731
    %735 = vset.pattern.permute.xlu0 0
    %736 = vperm.xlu0 %735, %v113
    %v737 = vpop.permute.xlu0 %736
    %740 = vset.pattern.permute.xlu0 0
    %741 = vperm.xlu0 %740, %v114
    %v742 = vpop.permute.xlu0 %741
    %745 = vset.pattern.permute.xlu0 0
    %746 = vperm.xlu0 %745, %v115
    %v747 = vpop.permute.xlu0 %746
    %v749 = vmul.f32 %v390, %v732
    %v750 = vmul.f32 %v391, %v737
    %v751 = vmul.f32 %v392, %v742
    %v752 = vmul.f32 %v393, %v747
    %v753 = vpack.c.bf16 %v749, %v749
    %v754 = vpack.c.bf16 %v750, %v750
    %v755 = vpack.c.bf16 %v751, %v751
    %v756 = vpack.c.bf16 %v752, %v752
    %757 = vset.pattern.permute.xlu0 1
    %758 = vperm.xlu0 %757, %v96
    %v759 = vpop.permute.xlu0 %758
    %761 = vset.pattern.permute.xlu0 1
    %762 = vperm.xlu0 %761, %v97
    %v763 = vpop.permute.xlu0 %762
    %765 = vset.pattern.permute.xlu0 1
    %766 = vperm.xlu0 %765, %v98
    %v767 = vpop.permute.xlu0 %766
    %769 = vset.pattern.permute.xlu0 1
    %770 = vperm.xlu0 %769, %v99
    %v771 = vpop.permute.xlu0 %770
    %v773 = vmul.f32 %v618, %v759
    %v774 = vmul.f32 %v619, %v763
    %v775 = vmul.f32 %v620, %v767
    %v776 = vmul.f32 %v621, %v771
    %v777 = vpack.c.bf16 %v773, %v773
    %v778 = vpack.c.bf16 %v774, %v774
    %v779 = vpack.c.bf16 %v775, %v775
    %v780 = vpack.c.bf16 %v776, %v776
    %v785 = vunpack.c.l.b16 %v753
    %v786 = vunpack.c.l.b16 %v754
    %v787 = vunpack.c.l.b16 %v755
    %v788 = vunpack.c.l.b16 %v756
    %v789 = vpack.c.b16 %v786, %v785
    %v790 = vpack.c.b16 %v788, %v787
    %v797 = vunpack.c.l.b16 %v777
    %v798 = vunpack.c.l.b16 %v778
    %v799 = vunpack.c.l.b16 %v779
    %v800 = vunpack.c.l.b16 %v780
    %v801 = vpack.c.b16 %v798, %v797
    %v802 = vpack.c.b16 %v800, %v799
    %v809 = vunpack.c.l.b16 %v725
    %v810 = vunpack.c.l.b16 %v726
    %v811 = vunpack.c.l.b16 %v727
    %v812 = vunpack.c.l.b16 %v728
    %v813 = vpack.c.b16 %v810, %v809
    %v814 = vpack.c.b16 %v812, %v811
    %v817 = vld [vmem:[#allocation7] sm:$0xf]
    %v818 = vld [vmem:[#allocation7 + $0x4] sm:$0xf]
    %v819 = vld [vmem:[#allocation7 + $0x8] sm:$0xf]
    %v820 = vld [vmem:[#allocation7 + $0xc] sm:$0xf]
    %v821 = vld [vmem:[#allocation7 + $0x10] sm:$0xf]
    %v822 = vld [vmem:[#allocation7 + $0x14] sm:$0xf]
    %v823 = vld [vmem:[#allocation7 + $0x18] sm:$0xf]
    %v824 = vld [vmem:[#allocation7 + $0x1c] sm:$0xf]
    %v825 = vld [vmem:[#allocation7 + $0x20] sm:$0xf]
    %v826 = vld [vmem:[#allocation7 + $0x24] sm:$0xf]
    %v827 = vld [vmem:[#allocation7 + $0x28] sm:$0xf]
    %v828 = vld [vmem:[#allocation7 + $0x2c] sm:$0xf]
    %v829 = vld [vmem:[#allocation7 + $0x30] sm:$0xf]
    %v830 = vld [vmem:[#allocation7 + $0x34] sm:$0xf]
    %v831 = vld [vmem:[#allocation7 + $0x38] sm:$0xf]
    %v832 = vld [vmem:[#allocation7 + $0x3c] sm:$0xf]
    %v833 = vld [vmem:[#allocation7 + $0x40] sm:$0xf]
    %v834 = vld [vmem:[#allocation7 + $0x44] sm:$0xf]
    %v835 = vld [vmem:[#allocation7 + $0x48] sm:$0xf]
    %v836 = vld [vmem:[#allocation7 + $0x4c] sm:$0xf]
    %v837 = vld [vmem:[#allocation7 + $0x50] sm:$0xf]
    %v838 = vld [vmem:[#allocation7 + $0x54] sm:$0xf]
    %v839 = vld [vmem:[#allocation7 + $0x58] sm:$0xf]
    %v840 = vld [vmem:[#allocation7 + $0x5c] sm:$0xf]
    %v841 = vld [vmem:[#allocation7 + $0x60] sm:$0xf]
    %v842 = vld [vmem:[#allocation7 + $0x64] sm:$0xf]
    %v843 = vld [vmem:[#allocation7 + $0x68] sm:$0xf]
    %v844 = vld [vmem:[#allocation7 + $0x6c] sm:$0xf]
    %v845 = vld [vmem:[#allocation7 + $0x70] sm:$0xf]
    %v846 = vld [vmem:[#allocation7 + $0x74] sm:$0xf]
    %v847 = vld [vmem:[#allocation7 + $0x78] sm:$0xf]
    %v848 = vld [vmem:[#allocation7 + $0x7c] sm:$0xf]
    %v849 = vld [vmem:[#allocation7 + $0x80] sm:$0xf]
    %v850 = vld [vmem:[#allocation7 + $0x84] sm:$0xf]
    %v851 = vld [vmem:[#allocation7 + $0x88] sm:$0xf]
    %v852 = vld [vmem:[#allocation7 + $0x8c] sm:$0xf]
    %v853 = vld [vmem:[#allocation7 + $0x90] sm:$0xf]
    %v854 = vld [vmem:[#allocation7 + $0x94] sm:$0xf]
    %v855 = vld [vmem:[#allocation7 + $0x98] sm:$0xf]
    %v856 = vld [vmem:[#allocation7 + $0x9c] sm:$0xf]
    %v857 = vld [vmem:[#allocation7 + $0xa0] sm:$0xf]
    %v858 = vld [vmem:[#allocation7 + $0xa4] sm:$0xf]
    %v859 = vld [vmem:[#allocation7 + $0xa8] sm:$0xf]
    %v860 = vld [vmem:[#allocation7 + $0xac] sm:$0xf]
    %v861 = vld [vmem:[#allocation7 + $0xb0] sm:$0xf]
    %v862 = vld [vmem:[#allocation7 + $0xb4] sm:$0xf]
    %v863 = vld [vmem:[#allocation7 + $0xb8] sm:$0xf]
    %v864 = vld [vmem:[#allocation7 + $0xbc] sm:$0xf]
    %v865 = vld [vmem:[%s11] sm:$0x1]
    %v867 = vperm.slane %v865, 0
    %v869 = vmul.f32 %v732, %v867
    %v870 = vmul.f32 %v737, %v867
    %v871 = vmul.f32 %v742, %v867
    %v872 = vmul.f32 %v747, %v867
    %v921 = vunpack.c.l.b16 %v817
    %v922 = vunpack.c.l.b16 %v818
    %v923 = vunpack.c.l.b16 %v819
    %v924 = vunpack.c.l.b16 %v820
    %v925 = vunpack.c.l.b16 %v821
    %v926 = vunpack.c.l.b16 %v822
    %v927 = vunpack.c.l.b16 %v823
    %v928 = vunpack.c.l.b16 %v824
    %v929 = vunpack.c.l.b16 %v825
    %v930 = vunpack.c.l.b16 %v826
    %v931 = vunpack.c.l.b16 %v827
    %v932 = vunpack.c.l.b16 %v828
    %v933 = vunpack.c.l.b16 %v829
    %v934 = vunpack.c.l.b16 %v830
    %v935 = vunpack.c.l.b16 %v831
    %v936 = vunpack.c.l.b16 %v832
    %v937 = vunpack.c.l.b16 %v833
    %v938 = vunpack.c.l.b16 %v834
    %v939 = vunpack.c.l.b16 %v835
    %v940 = vunpack.c.l.b16 %v836
    %v941 = vunpack.c.l.b16 %v837
    %v942 = vunpack.c.l.b16 %v838
    %v943 = vunpack.c.l.b16 %v839
    %v944 = vunpack.c.l.b16 %v840
    %v945 = vunpack.c.l.b16 %v841
    %v946 = vunpack.c.l.b16 %v842
    %v947 = vunpack.c.l.b16 %v843
    %v948 = vunpack.c.l.b16 %v844
    %v949 = vunpack.c.l.b16 %v845
    %v950 = vunpack.c.l.b16 %v846
    %v951 = vunpack.c.l.b16 %v847
    %v952 = vunpack.c.l.b16 %v848
    %v953 = vunpack.c.l.b16 %v849
    %v954 = vunpack.c.l.b16 %v850
    %v955 = vunpack.c.l.b16 %v851
    %v956 = vunpack.c.l.b16 %v852
    %v957 = vunpack.c.l.b16 %v853
    %v958 = vunpack.c.l.b16 %v854
    %v959 = vunpack.c.l.b16 %v855
    %v960 = vunpack.c.l.b16 %v856
    %v961 = vunpack.c.l.b16 %v857
    %v962 = vunpack.c.l.b16 %v858
    %v963 = vunpack.c.l.b16 %v859
    %v964 = vunpack.c.l.b16 %v860
    %v965 = vunpack.c.l.b16 %v861
    %v966 = vunpack.c.l.b16 %v862
    %v967 = vunpack.c.l.b16 %v863
    %v968 = vunpack.c.l.b16 %v864
    %v969 = vpack.c.b16 %v922, %v921
    %v970 = vpack.c.b16 %v924, %v923
    %v971 = vpack.c.b16 %v926, %v925
    %v972 = vpack.c.b16 %v928, %v927
    %v973 = vpack.c.b16 %v930, %v929
    %v974 = vpack.c.b16 %v932, %v931
    %v975 = vpack.c.b16 %v934, %v933
    %v976 = vpack.c.b16 %v936, %v935
    %v977 = vpack.c.b16 %v938, %v937
    %v978 = vpack.c.b16 %v940, %v939
    %v979 = vpack.c.b16 %v942, %v941
    %v980 = vpack.c.b16 %v944, %v943
    %v981 = vpack.c.b16 %v946, %v945
    %v982 = vpack.c.b16 %v948, %v947
    %v983 = vpack.c.b16 %v950, %v949
    %v984 = vpack.c.b16 %v952, %v951
    %v985 = vpack.c.b16 %v954, %v953
    %v986 = vpack.c.b16 %v956, %v955
    %v987 = vpack.c.b16 %v958, %v957
    %v988 = vpack.c.b16 %v960, %v959
    %v989 = vpack.c.b16 %v962, %v961
    %v990 = vpack.c.b16 %v964, %v963
    %v991 = vpack.c.b16 %v966, %v965
    %v992 = vpack.c.b16 %v968, %v967
    %1017 = vmatpush.bf16.msra.mxu0 %v976
    %1018 = vmatpush.bf16.msra.mxu0 %v975
    %1019 = vmatpush.bf16.msra.mxu0 %v974
    %1020 = vmatpush.bf16.msra.mxu0 %v973
    %1021 = vmatpush.bf16.msra.mxu0 %v972
    %1022 = vmatpush.bf16.msra.mxu0 %v971
    %1023 = vmatpush.bf16.msra.mxu0 %v970
    %1024 = vmatpush.bf16.msra.mxu0 %v969
    %1025 = vmatmul.bf16.gmra.mxu0 %v789
    %v1026 = vpop.f32.mrf.mxu0
    %v1027 = vadd.f32 %v869, %v1026
    %v1028 = vpop.f32.mrf.mxu0
    %v1029 = vadd.f32 %v870, %v1028
    %1030 = vmatmul.bf16.gmra.mxu0 %v790
    %v1031 = vpop.f32.mrf.mxu0
    %v1032 = vadd.f32 %v871, %v1031
    %v1033 = vpop.f32.mrf.mxu0
    %v1034 = vadd.f32 %v872, %v1033
    %1035 = vdwg.mxu0
    %1036 = vmatpush.bf16.msra.mxu0 %v984
    %1037 = vmatpush.bf16.msra.mxu0 %v983
    %1038 = vmatpush.bf16.msra.mxu0 %v982
    %1039 = vmatpush.bf16.msra.mxu0 %v981
    %1040 = vmatpush.bf16.msra.mxu0 %v980
    %1041 = vmatpush.bf16.msra.mxu0 %v979
    %1042 = vmatpush.bf16.msra.mxu0 %v978
    %1043 = vmatpush.bf16.msra.mxu0 %v977
    %1044 = vmatmul.bf16.gmra.mxu0 %v801
    %v1045 = vpop.f32.mrf.mxu0
    %v1046 = vadd.f32 %v1027, %v1045
    %v1047 = vpop.f32.mrf.mxu0
    %v1048 = vadd.f32 %v1029, %v1047
    %1049 = vmatmul.bf16.gmra.mxu0 %v802
    %v1050 = vpop.f32.mrf.mxu0
    %v1051 = vadd.f32 %v1032, %v1050
    %v1052 = vpop.f32.mrf.mxu0
    %v1053 = vadd.f32 %v1034, %v1052
    %1054 = vdwg.mxu0
    %1055 = vmatpush.bf16.msra.mxu0 %v992
    %1056 = vmatpush.bf16.msra.mxu0 %v991
    %1057 = vmatpush.bf16.msra.mxu0 %v990
    %1058 = vmatpush.bf16.msra.mxu0 %v989
    %1059 = vmatpush.bf16.msra.mxu0 %v988
    %1060 = vmatpush.bf16.msra.mxu0 %v987
    %1061 = vmatpush.bf16.msra.mxu0 %v986
    %1062 = vmatpush.bf16.msra.mxu0 %v985
    %1063 = vmatmul.bf16.gmra.mxu0 %v813
    %v1064 = vpop.f32.mrf.mxu0
    %v1065 = vadd.f32 %v1046, %v1064
    %v1066 = vpop.f32.mrf.mxu0
    %v1067 = vadd.f32 %v1048, %v1066
    %1068 = vmatmul.bf16.gmra.mxu0 %v814
    %v1069 = vpop.f32.mrf.mxu0
    %v1070 = vadd.f32 %v1051, %v1069
    %v1071 = vpop.f32.mrf.mxu0
    %v1072 = vadd.f32 %v1053, %v1071
    %1073 = vdwg.mxu0
    %v1074 = vld [vmem:[%s12] sm:$0x1]
    %v1076 = vperm.slane %v1074, 0
    %v1078 = vmul.f32 %v759, %v1076
    %v1079 = vmul.f32 %v763, %v1076
    %v1080 = vmul.f32 %v767, %v1076
    %v1081 = vmul.f32 %v771, %v1076
    %v1082 = vadd.f32 %v1065, %v1078
    %v1083 = vadd.f32 %v1067, %v1079
    %v1084 = vadd.f32 %v1070, %v1080
    %v1085 = vadd.f32 %v1072, %v1081
    %1086 = vst [vmem:[#allocation8] sm:$0xff] %v1082
    %1087 = vst [vmem:[#allocation8 + $0x8] sm:$0xff] %v1083
    %1088 = vst [vmem:[#allocation8 + $0x10] sm:$0xff] %v1084
    %1089 = vst [vmem:[#allocation8 + $0x18] sm:$0xff] %v1085
    // Predicated region
    $region66: #{tpu_custom_call.1} parent=1 // pred_check
      _
    $region67: #{tpu_custom_call.1} parent=1 // pred_check_branch
      %1091 = sbr.rel (0) target = $region69
    $region68: #{tpu_custom_call.1} parent=1 // pred_region
      %1093 = vsyncadd [#allocation4], 0
      %s1094 = sshll.u32 [#allocation8], 4
      %s1095 = int_to_ptr.vmem [resolvable:$true] %s1094
      %s1096 = sshll.u32 %s13, 4
      %s1097 = int_to_ptr.hbm [resolvable:$true] %s1096
      %1102 = dma.vmem_to_hbm [thread:$0]  %s1095, 512, %s1097, [#allocation4], 128, 128, 8
    $region69: #{tpu_custom_call.1} parent=1 // pred_fallthru
      _
    // Predicated region
    $region70: #{tpu_custom_call.1} parent=1 // pred_check
      _
    $region71: #{tpu_custom_call.1} parent=1 // pred_check_branch
      %1104 = sbr.rel (0) target = $region73
    $region72: #{tpu_custom_call.1} parent=1 // pred_region
      %1106 = dma.done [#allocation4], 512
    $region73: #{tpu_custom_call.1} parent=1 // pred_fallthru
      _
    %1107 = vsyncpa [#allocation3], 1
    %1108 = vsyncpa [#allocation6], 1
    %1109 = vsyncpa [#allocation4], 1

</llo_original>
